<compile_context>
chip_gen: v6e
topology: v6e:2x2x1
jax: 0.10.0
libtpu: 0.0.40
codegen_flags: <defaults>
</compile_context>

<pallas_src>
import math
from functools import partial

import jax
import jax.numpy as jnp
from jax.experimental import pallas as pl
from jax.experimental.pallas import tpu as pltpu

D_K = 64
D_V = 64


def _sdpa_kernel(q_ref, k_ref, v_ref, ctx_ref, attn_ref, *,
                 scale, fold_scale_into_q, mm_precision, exp_dtype,
                 approx_recip):
    # q_ref: (T, Lq, d_k), k_ref: (T, Lk, d_k), v_ref: (T, Lk, d_v)
    q = q_ref[...]
    k = k_ref[...]
    v = v_ref[...]

    if fold_scale_into_q:
        # O(Lq*d_k) instead of O(Lq*Lk); exact because scale is a power of two.
        q = q * jnp.asarray(scale, q.dtype)

    # scores = (Q / sqrt(dk)) @ K^T, batched over the T heads in this block.
    # Operands stay in their native dtype on the MXU, accumulate in f32; f32
    # inputs use HIGHEST precision so results match an f32 reference.
    scores = jnp.einsum("bqd,bkd->bqk", q, k,
                        preferred_element_type=jnp.float32,
                        precision=mm_precision)
    if not fold_scale_into_q:
        scores = scores * jnp.float32(scale)

    # Numerically-stable softmax along the last axis (matches nn.Softmax(-1)).
    m = jnp.max(scores, axis=-1, keepdims=True)
    shifted = scores - m
    if exp_dtype != jnp.float32:
        # Only taken for bf16 inputs (EUP throughput); f32 / v5e keep f32 exp.
        e = jnp.exp(shifted.astype(exp_dtype)).astype(jnp.float32)
    else:
        e = jnp.exp(shifted)
    denom = jnp.sum(e, axis=-1, keepdims=True)
    # Approx (EUP) reciprocal only when the returned attn is 16-bit; exact for
    # f32 outputs so the user-visible softmax matches the reference.
    inv = pl.reciprocal(denom, approx=approx_recip)
    attn = e * inv

    # Cast once, store attn before computing ctx, reuse the cast for PV.
    attn_lo = attn.astype(attn_ref.dtype)
    attn_ref[...] = attn_lo
    pv_lhs = attn_lo if attn_ref.dtype == v.dtype else attn.astype(v.dtype)

    ctx = jnp.einsum("bqk,bkd->bqd", pv_lhs, v,
                     preferred_element_type=jnp.float32,
                     precision=mm_precision)
    ctx_ref[...] = ctx.astype(ctx_ref.dtype)


def _vmem_budgets():
    """Generation-aware VMEM sizing (v5e/v6e: 128 MiB, v7x: 64 MiB per TC)."""
    try:
        cap = int(pltpu.get_tpu_info().vmem_capacity_bytes)
    except Exception:
        cap = 64 * 1024 * 1024          # assume v7x per-TC (most constrained)
    block_budget = min(12 * 1024 * 1024, cap // 6)   # per-step block footprint
    vmem_limit = min(48 * 1024 * 1024, cap // 2)     # scoped limit w/ headroom
    return block_budget, vmem_limit


def _bytes_per_head(Lq, Lk, dk, dv, itemsize):
    """Per-(batch,head) VMEM footprint of one grid step.

    Double-buffered in/out blocks plus the in-kernel f32 intermediates
    (scores / e / attn, the f32 ctx accumulator) and the low-precision attn
    copy — the intermediates were previously ignored and could overflow VMEM
    on v7x for large T.
    """
    blocks = 2 * itemsize * (Lq * dk + Lk * dk + Lk * dv + Lq * dv + Lq * Lk)
    intermediates = 4 * (3 * Lq * Lk + Lq * dv) + itemsize * Lq * Lk
    return blocks + intermediates


def _pick_heads_per_step(G, per_head_bytes, budget_bytes):
    """Heads per grid step: small tiles, many steps.

    The kernel is HBM-bound on the attn writeback, so low-MiB tiles already
    sit near the HBM roofline (per-step overhead ~0.35 us).  Prefer >= 8 grid
    steps so the auto-pipeline overlaps DMA with compute on each TensorCore
    (>= 4 steps per core when v7x shards the parallel axis across 2 TCs).
    """
    divisors = [t for t in range(1, G + 1) if G % t == 0]
    fitting = [t for t in divisors if t * per_head_bytes <= budget_bytes] or [1]
    for min_steps in (8, 4, 2):
        ok = [t for t in fitting if G // t >= min_steps]
        if ok:
            return max(ok)
    return max(fitting)


def scaled_dot_product_attention(Q, K, V):
    """Q: [B, H, Lq, d_k], K: [B, H, Lk, d_k], V: [B, H, Lk, d_v]
    Returns (context [B, H, Lq, d_v], attn [B, H, Lq, Lk])."""
    B, H, Lq, dk = Q.shape
    _, _, Lk, _ = K.shape
    dv = V.shape[-1]
    G = B * H

    q = Q.reshape(G, Lq, dk)
    k = K.reshape(G, Lk, dk)
    v = V.reshape(G, Lk, dv)

    itemsize = jnp.dtype(Q.dtype).itemsize
    block_budget, vmem_limit = _vmem_budgets()
    T = _pick_heads_per_step(G, _bytes_per_head(Lq, Lk, dk, dv, itemsize),
                             block_budget)
    grid = (G // T,)

    is_f32 = jnp.dtype(Q.dtype) == jnp.float32
    # 1/sqrt(dk) is exactly representable iff dk is an even power of two
    # (e.g. 64 -> 0.125); otherwise scale the f32 scores like the reference.
    root = math.isqrt(dk)
    fold_scale = ((dk & (dk - 1)) == 0) and (root * root == dk)
    mm_precision = jax.lax.Precision.HIGHEST if is_f32 else None
    exp_dtype = jnp.bfloat16 if jnp.dtype(Q.dtype) == jnp.bfloat16 else jnp.float32
    approx_recip = itemsize <= 2        # exact reciprocal for f32 outputs

    kernel = partial(
        _sdpa_kernel,
        scale=1.0 / math.sqrt(dk),
        fold_scale_into_q=fold_scale,
        mm_precision=mm_precision,
        exp_dtype=exp_dtype,
        approx_recip=approx_recip,
    )

    ctx, attn = pl.pallas_call(
        kernel,
        out_shape=(
            jax.ShapeDtypeStruct((G, Lq, dv), Q.dtype),
            jax.ShapeDtypeStruct((G, Lq, Lk), Q.dtype),
        ),
        grid_spec=pltpu.PrefetchScalarGridSpec(
            num_scalar_prefetch=0,
            grid=grid,
            in_specs=[
                pl.BlockSpec((T, Lq, dk), lambda i: (i, 0, 0)),
                pl.BlockSpec((T, Lk, dk), lambda i: (i, 0, 0)),
                pl.BlockSpec((T, Lk, dv), lambda i: (i, 0, 0)),
            ],
            out_specs=[
                pl.BlockSpec((T, Lq, dv), lambda i: (i, 0, 0)),
                pl.BlockSpec((T, Lq, Lk), lambda i: (i, 0, 0)),
            ],
        ),
        compiler_params=pltpu.CompilerParams(
            dimension_semantics=("parallel",),
            vmem_limit_bytes=vmem_limit,
        ),
    )(q, k, v)

    return ctx.reshape(B, H, Lq, dv), attn.reshape(B, H, Lq, Lk)


def _reference(Q, K, V):
    dk = Q.shape[-1]
    scores = jnp.einsum("bhqd,bhkd->bhqk", Q, K,
                        precision=jax.lax.Precision.HIGHEST) / math.sqrt(dk)
    attn = jax.nn.softmax(scores, axis=-1)
    ctx = jnp.einsum("bhqk,bhkd->bhqd", attn, V,
                     precision=jax.lax.Precision.HIGHEST)
    return ctx, attn


if __name__ == "__main__":
    B, H, Lq, Lk = 2, 4, 16, 16
    key = jax.random.PRNGKey(0)
    kq, kk, kv = jax.random.split(key, 3)
    Q = jax.random.normal(kq, (B, H, Lq, D_K), dtype=jnp.float32)
    K = jax.random.normal(kk, (B, H, Lk, D_K), dtype=jnp.float32)
    V = jax.random.normal(kv, (B, H, Lk, D_V), dtype=jnp.float32)

    ctx, attn = scaled_dot_product_attention(Q, K, V)
    jax.block_until_ready((ctx, attn))

    ctx_ref, attn_ref = _reference(Q, K, V)
    assert ctx.shape == (B, H, Lq, D_V) and attn.shape == (B, H, Lq, Lk)
    assert jnp.allclose(ctx, ctx_ref, atol=2e-3, rtol=2e-3), \
        float(jnp.max(jnp.abs(ctx - ctx_ref)))
    assert jnp.allclose(attn, attn_ref, atol=2e-3, rtol=2e-3), \
        float(jnp.max(jnp.abs(attn - attn_ref)))

    print("KERNEL_OK")
</pallas_src>

<mosaic_0001>
module attributes {stable_mosaic.version = 11 : i64} {
  func.func @_sdpa_kernel(%arg0: i32, %arg1: memref<1x16x64xf32, #tpu.memory_space<vmem>>, %arg2: memref<1x16x64xf32, #tpu.memory_space<vmem>>, %arg3: memref<1x16x64xf32, #tpu.memory_space<vmem>>, %arg4: memref<1x16x64xf32, #tpu.memory_space<vmem>>, %arg5: memref<1x16x16xf32, #tpu.memory_space<vmem>>) attributes {dimension_semantics = [#tpu.dimension_semantics<parallel>], iteration_bounds = array<i64: 8>, scalar_prefetch = 0 : i64, scratch_operands = 0 : i64, tpu.core_type = #tpu.core_type<tc>, window_params = [{transform_indices = @transform_0, window_bounds = array<i64: 1, 16, 64>}, {transform_indices = @transform_1, window_bounds = array<i64: 1, 16, 64>}, {transform_indices = @transform_2, window_bounds = array<i64: 1, 16, 64>}, {transform_indices = @transform_3, window_bounds = array<i64: 1, 16, 64>}, {transform_indices = @transform_4, window_bounds = array<i64: 1, 16, 16>}]} {
    %c0 = arith.constant 0 : index
    %c0_0 = arith.constant 0 : index
    %c0_1 = arith.constant 0 : index
    %0 = vector.load %arg1[%c0, %c0_0, %c0_1] : memref<1x16x64xf32, #tpu.memory_space<vmem>>, vector<1x16x64xf32>
    %c0_2 = arith.constant 0 : index
    %c0_3 = arith.constant 0 : index
    %c0_4 = arith.constant 0 : index
    %1 = vector.load %arg2[%c0_2, %c0_3, %c0_4] : memref<1x16x64xf32, #tpu.memory_space<vmem>>, vector<1x16x64xf32>
    %c0_5 = arith.constant 0 : index
    %c0_6 = arith.constant 0 : index
    %c0_7 = arith.constant 0 : index
    %2 = vector.load %arg3[%c0_5, %c0_6, %c0_7] : memref<1x16x64xf32, #tpu.memory_space<vmem>>, vector<1x16x64xf32>
    %cst = arith.constant 1.250000e-01 : f32
    %3 = vector.broadcast %cst : f32 to vector<1x16x64xf32>
    %4 = arith.mulf %0, %3 : vector<1x16x64xf32>
    "tpu.trace_start"() <{level = 10 : i32, message = "bqd,bkd->bqk"}> : () -> ()
    %cst_8 = arith.constant dense<0.000000e+00> : vector<1x16x16xf32>
    %5 = tpu.matmul %4, %1, %cst_8 {dimension_numbers = #tpu.dot_dimension_numbers<[2], [2], [1], [1], [0, 0, 0, 1, 1, 1], [0], [0]>, precision = #tpu.contract_precision<fp32>} : vector<1x16x64xf32>, vector<1x16x64xf32>, vector<1x16x16xf32> -> vector<1x16x16xf32>
    "tpu.trace_stop"() : () -> ()
    %cst_9 = arith.constant dense<0xFF800000> : vector<1x16xf32>
    %6 = vector.multi_reduction <maximumf>, %5, %cst_9 [2] : vector<1x16x16xf32> to vector<1x16xf32>
    %7 = vector.shape_cast %6 : vector<1x16xf32> to vector<1x16x1xf32>
    %8 = vector.broadcast %7 : vector<1x16x1xf32> to vector<1x16x16xf32>
    %9 = arith.subf %5, %8 : vector<1x16x16xf32>
    %10 = math.exp %9 : vector<1x16x16xf32>
    %cst_10 = arith.constant dense<0.000000e+00> : vector<1x16xf32>
    %11 = vector.multi_reduction <add>, %10, %cst_10 [2] : vector<1x16x16xf32> to vector<1x16xf32>
    %12 = vector.shape_cast %11 : vector<1x16xf32> to vector<1x16x1xf32>
    %13 = tpu.reciprocal %12 : vector<1x16x1xf32> -> vector<1x16x1xf32>
    %14 = vector.broadcast %13 : vector<1x16x1xf32> to vector<1x16x16xf32>
    %15 = arith.mulf %10, %14 : vector<1x16x16xf32>
    %c0_11 = arith.constant 0 : index
    %c0_12 = arith.constant 0 : index
    %c0_13 = arith.constant 0 : index
    %16 = vector.load %arg5[%c0_11, %c0_12, %c0_13] : memref<1x16x16xf32, #tpu.memory_space<vmem>>, vector<1x16x16xf32>
    tpu.vector_store %arg5[%c0_11, %c0_12, %c0_13], %15 {strides = array<i32>} : memref<1x16x16xf32, #tpu.memory_space<vmem>>, vector<1x16x16xf32>,
    "tpu.trace_start"() <{level = 10 : i32, message = "bqk,bkd->bqd"}> : () -> ()
    %cst_14 = arith.constant dense<0.000000e+00> : vector<1x16x64xf32>
    %17 = tpu.matmul %15, %2, %cst_14 {dimension_numbers = #tpu.dot_dimension_numbers<[2], [1], [1], [2], [0, 0, 0, 1, 1, 2], [0], [0]>, precision = #tpu.contract_precision<fp32>} : vector<1x16x16xf32>, vector<1x16x64xf32>, vector<1x16x64xf32> -> vector<1x16x64xf32>
    "tpu.trace_stop"() : () -> ()
    %c0_15 = arith.constant 0 : index
    %c0_16 = arith.constant 0 : index
    %c0_17 = arith.constant 0 : index
    %18 = vector.load %arg4[%c0_15, %c0_16, %c0_17] : memref<1x16x64xf32, #tpu.memory_space<vmem>>, vector<1x16x64xf32>
    tpu.vector_store %arg4[%c0_15, %c0_16, %c0_17], %17 {strides = array<i32>} : memref<1x16x64xf32, #tpu.memory_space<vmem>>, vector<1x16x64xf32>,
    return
  }
  func.func @transform_0(%arg0: i32) -> (i32, i32, i32) {
    %c0_i32 = arith.constant 0 : i32
    %c0_i32_0 = arith.constant 0 : i32
    %c0_i32_1 = arith.constant 0 : i32
    return %arg0, %c0_i32, %c0_i32_0 : i32, i32, i32
  }
  func.func @transform_1(%arg0: i32) -> (i32, i32, i32) {
    %c0_i32 = arith.constant 0 : i32
    %c0_i32_0 = arith.constant 0 : i32
    %c0_i32_1 = arith.constant 0 : i32
    return %arg0, %c0_i32, %c0_i32_0 : i32, i32, i32
  }
  func.func @transform_2(%arg0: i32) -> (i32, i32, i32) {
    %c0_i32 = arith.constant 0 : i32
    %c0_i32_0 = arith.constant 0 : i32
    %c0_i32_1 = arith.constant 0 : i32
    return %arg0, %c0_i32, %c0_i32_0 : i32, i32, i32
  }
  func.func @transform_3(%arg0: i32) -> (i32, i32, i32) {
    %c0_i32 = arith.constant 0 : i32
    %c0_i32_0 = arith.constant 0 : i32
    %c0_i32_1 = arith.constant 0 : i32
    return %arg0, %c0_i32, %c0_i32_0 : i32, i32, i32
  }
  func.func @transform_4(%arg0: i32) -> (i32, i32, i32) {
    %c0_i32 = arith.constant 0 : i32
    %c0_i32_0 = arith.constant 0 : i32
    %c0_i32_1 = arith.constant 0 : i32
    return %arg0, %c0_i32, %c0_i32_0 : i32, i32, i32
  }
}

</mosaic_0001>

<llo_original>
// kernel: tpu_custom_call.1
$region0: #{tpu_custom_call.1}
  #allocation0 [shape = 'u32[]', space=smem, size = 0x4, offset = 0x4, fixed_abs, tag = 'smem constant byte address 0x4 - core index']
  #allocation1 [shape = 'u32[144,128]{1,0:T(1,128)}', space=vmem, size = 0x12000, scoped, tag = 'internal scratch']
  %s0 = inlined_call_operand.hbm [shape: f32[8,16,64], index: 0, kind: input, shape index: {}]
  %s1 = inlined_call_operand.hbm [shape: f32[8,16,64], index: 1, kind: input, shape index: {}]
  %s2 = inlined_call_operand.hbm [shape: f32[8,16,64], index: 2, kind: input, shape index: {}]
  %s3 = inlined_call_operand.hbm [shape: f32[8,16,64], index: 3, kind: output, shape index: {0}]
  %s4 = inlined_call_operand.hbm [shape: f32[8,16,16], index: 4, kind: output, shape index: {1}]
  %5 = xla_tuple %s3, %s4
  %s6 = sld [smem:[#allocation0]]
  $region65: #{tpu_custom_call.1} parent=0
    _
  %s8 = ssub.s32 1, %s6
  %s9 = scalar_select 0, %s8, %s6
  $region1: #{tpu_custom_call.1} parent=0
    #allocation2 [shape = 'u8[16384]{0}', space=vmem, size = 0x4000, scoped, tag = 'input window, operand 0']
    #allocation3 [shape = 's32[2]{0}', space=sflag, size = 0x8, scoped, tag = 'scoped memory for tpu_custom_call.1']
    #allocation4 [shape = 's32[2]{0}', space=sflag, size = 0x8, scoped, tag = 'scoped memory for tpu_custom_call.1']
    #allocation5 [shape = 'u8[16384]{0}', space=vmem, size = 0x4000, scoped, tag = 'input window, operand 1']
    #allocation6 [shape = 's32[2]{0}', space=sflag, size = 0x8, scoped, tag = 'scoped memory for tpu_custom_call.1']
    #allocation7 [shape = 'u8[16384]{0}', space=vmem, size = 0x4000, scoped, tag = 'input window, operand 2']
    #allocation8 [shape = 'u8[16384]{0}', space=vmem, size = 0x4000, scoped, tag = 'output window, operand 0']
    #allocation9 [shape = 'u8[16384]{0}', space=vmem, size = 0x4000, scoped, tag = 'output window, operand 1']
    #allocation10 [shape = 's32[2]{0}', space=sflag, size = 0x8, scoped, tag = 'scoped memory for tpu_custom_call.1']
    %10 = vsyncpa [#allocation3], 0
    %s11 = scalar_lea.sflag [#allocation3], 1
    %12 = vsyncpa %s11, 0
    %13 = vsyncpa [#allocation6], 0
    %s14 = scalar_lea.sflag [#allocation6], 1
    %15 = vsyncpa %s14, 0
    %16 = vsyncpa [#allocation4], 0
    %s17 = scalar_lea.sflag [#allocation4], 1
    %18 = vsyncpa %s17, 0
    %19 = vsyncpa [#allocation10], 0
    %s20 = scalar_lea.sflag [#allocation10], 1
    %21 = vsyncpa %s20, 0
    loop: start=0, step=1, limit=10
    $region2: #{tpu_custom_call.1} parent=1 // loop_pre_header
      _
    $region3: #{tpu_custom_call.1} parent=1 // loop_header
      %s23 = sphi 0, %s27
      %p24 = scmp.ge.s32.totalorder %s23, 10
      %s33 = sphi 0, %s35
      %s36 = sphi 0, %s33
      %s37 = sphi 0, %s36
      %s53 = sphi 0, %s37
      %s59 = sphi 0, %s61
      %s62 = sphi 0, %s59
      %s63 = sphi 0, %s62
      %s79 = sphi 0, %s63
      %s85 = sphi 0, %s87
      %s88 = sphi 0, %s85
      %s89 = sphi 0, %s88
      %s105 = sphi 0, %s89
      %s111 = sphi 0, %s113
      %s114 = sphi 0, %s111
      %s115 = sphi 0, %s114
      %s131 = sphi 0, %s115
      %s137 = sphi 0, %s139
      %s140 = sphi 0, %s137
      %s141 = sphi 0, %s140
      %s157 = sphi 0, %s141
    $region4: #{tpu_custom_call.1} parent=1 // loop_header_branch
      %26 = sbr.rel (%p24) target = $region8
    $region5: #{tpu_custom_call.1} parent=1 // loop_body
      %s28 = ssub.s32 %s23, 1
      %s29 = ssub.s32 %s23, 2
      %s30 = sadd.s32 %s23, 1
      %s31 = ssub.s32 %s23, %s30
      %p32 = scmp.eq.s32.totalorder %s31, 0
      %s34 = sadd.s32 %s33, 1
      %s35 = scalar_select %p32, %s33, %s34
      %p38 = pneg %p32
      %p39 = scmp.eq.s32.totalorder %s23, 7
      %p40 = por %p38, %p39
      %p41 = scmp.ne.s32.totalorder %s33, %s36
      %p42 = scmp.eq.s32.totalorder %s23, 0
      %p43 = por %p41, %p42
      %p44 = scmp.ne.s32.totalorder %s33, %s36
      %p45 = scmp.eq.s32.totalorder %s28, 7
      %p46 = por %p44, %p45
      %p47 = scmp.ne.s32.totalorder %s36, %s37
      %p48 = scmp.eq.s32.totalorder %s28, 0
      %p49 = por %p47, %p48
      %p50 = scmp.ne.s32.totalorder %s36, %s37
      %p51 = scmp.eq.s32.totalorder %s29, 7
      %p52 = por %p50, %p51
      %p54 = scmp.ne.s32.totalorder %s37, %s53
      %p55 = scmp.eq.s32.totalorder %s29, 0
      %p56 = por %p54, %p55
      %s57 = ssub.s32 %s23, %s30
      %p58 = scmp.eq.s32.totalorder %s57, 0
      %s60 = sadd.s32 %s59, 1
      %s61 = scalar_select %p58, %s59, %s60
      %p64 = pneg %p58
      %p65 = scmp.eq.s32.totalorder %s23, 7
      %p66 = por %p64, %p65
      %p67 = scmp.ne.s32.totalorder %s59, %s62
      %p68 = scmp.eq.s32.totalorder %s23, 0
      %p69 = por %p67, %p68
      %p70 = scmp.ne.s32.totalorder %s59, %s62
      %p71 = scmp.eq.s32.totalorder %s28, 7
      %p72 = por %p70, %p71
      %p73 = scmp.ne.s32.totalorder %s62, %s63
      %p74 = scmp.eq.s32.totalorder %s28, 0
      %p75 = por %p73, %p74
      %p76 = scmp.ne.s32.totalorder %s62, %s63
      %p77 = scmp.eq.s32.totalorder %s29, 7
      %p78 = por %p76, %p77
      %p80 = scmp.ne.s32.totalorder %s63, %s79
      %p81 = scmp.eq.s32.totalorder %s29, 0
      %p82 = por %p80, %p81
      %s83 = ssub.s32 %s23, %s30
      %p84 = scmp.eq.s32.totalorder %s83, 0
      %s86 = sadd.s32 %s85, 1
      %s87 = scalar_select %p84, %s85, %s86
      %p90 = pneg %p84
      %p91 = scmp.eq.s32.totalorder %s23, 7
      %p92 = por %p90, %p91
      %p93 = scmp.ne.s32.totalorder %s85, %s88
      %p94 = scmp.eq.s32.totalorder %s23, 0
      %p95 = por %p93, %p94
      %p96 = scmp.ne.s32.totalorder %s85, %s88
      %p97 = scmp.eq.s32.totalorder %s28, 7
      %p98 = por %p96, %p97
      %p99 = scmp.ne.s32.totalorder %s88, %s89
      %p100 = scmp.eq.s32.totalorder %s28, 0
      %p101 = por %p99, %p100
      %p102 = scmp.ne.s32.totalorder %s88, %s89
      %p103 = scmp.eq.s32.totalorder %s29, 7
      %p104 = por %p102, %p103
      %p106 = scmp.ne.s32.totalorder %s89, %s105
      %p107 = scmp.eq.s32.totalorder %s29, 0
      %p108 = por %p106, %p107
      %s109 = ssub.s32 %s23, %s30
      %p110 = scmp.eq.s32.totalorder %s109, 0
      %s112 = sadd.s32 %s111, 1
      %s113 = scalar_select %p110, %s111, %s112
      %p116 = pneg %p110
      %p117 = scmp.eq.s32.totalorder %s23, 7
      %p118 = por %p116, %p117
      %p119 = scmp.ne.s32.totalorder %s111, %s114
      %p120 = scmp.eq.s32.totalorder %s23, 0
      %p121 = por %p119, %p120
      %p122 = scmp.ne.s32.totalorder %s111, %s114
      %p123 = scmp.eq.s32.totalorder %s28, 7
      %p124 = por %p122, %p123
      %p125 = scmp.ne.s32.totalorder %s114, %s115
      %p126 = scmp.eq.s32.totalorder %s28, 0
      %p127 = por %p125, %p126
      %p128 = scmp.ne.s32.totalorder %s114, %s115
      %p129 = scmp.eq.s32.totalorder %s29, 7
      %p130 = por %p128, %p129
      %p132 = scmp.ne.s32.totalorder %s115, %s131
      %p133 = scmp.eq.s32.totalorder %s29, 0
      %p134 = por %p132, %p133
      %s135 = ssub.s32 %s23, %s30
      %p136 = scmp.eq.s32.totalorder %s135, 0
      %s138 = sadd.s32 %s137, 1
      %s139 = scalar_select %p136, %s137, %s138
      %p142 = pneg %p136
      %p143 = scmp.eq.s32.totalorder %s23, 7
      %p144 = por %p142, %p143
      %p145 = scmp.ne.s32.totalorder %s137, %s140
      %p146 = scmp.eq.s32.totalorder %s23, 0
      %p147 = por %p145, %p146
      %p148 = scmp.ne.s32.totalorder %s137, %s140
      %p149 = scmp.eq.s32.totalorder %s28, 7
      %p150 = por %p148, %p149
      %p151 = scmp.ne.s32.totalorder %s140, %s141
      %p152 = scmp.eq.s32.totalorder %s28, 0
      %p153 = por %p151, %p152
      %p154 = scmp.ne.s32.totalorder %s140, %s141
      %p155 = scmp.eq.s32.totalorder %s29, 7
      %p156 = por %p154, %p155
      %p158 = scmp.ne.s32.totalorder %s141, %s157
      %p159 = scmp.eq.s32.totalorder %s29, 0
      %p160 = por %p158, %p159
      %p161 = scmp.le.s32.totalorder 1, %s23
      %p162 = scmp.lt.s32.totalorder %s23, 9
      %p163 = pnand %p161, %p162
      %p164 = pneg %p163
      // Predicated region
      $region9: #{tpu_custom_call.1} parent=5 // pred_check
        _
      $region10: #{tpu_custom_call.1} parent=5 // pred_check_branch
        %166 = sbr.rel (%p163) target = $region12
      $region11: #{tpu_custom_call.1} parent=5 // pred_region
        %s167 = ssub.s32 %s23, 1
      $region12: #{tpu_custom_call.1} parent=5 // pred_fallthru
        _
      %p168 = scmp.lt.s32.totalorder %s23, 8
      // Predicated region
      $region13: #{tpu_custom_call.1} parent=5 // pred_check
        %p169 = pneg %p168
      $region14: #{tpu_custom_call.1} parent=5 // pred_check_branch
        %171 = sbr.rel (%p169) target = $region16
      $region15: #{tpu_custom_call.1} parent=5 // pred_region
        // Predicated region
        $region17: #{tpu_custom_call.1} parent=15 // pred_check
          %p172 = pneg %p43
        $region18: #{tpu_custom_call.1} parent=15 // pred_check_branch
          %174 = sbr.rel (%p172) target = $region20
        $region19: #{tpu_custom_call.1} parent=15 // pred_region
          %s175 = sand.u32 %s33, 1
          %s176 = scalar_lea.sflag [#allocation3], %s175
          %s177 = sand.u32 %s33, 1
          %s178 = smul.addr %s177, 16
          %s179 = scalar_lea.vmem [#allocation2], %s178
          %s181 = ssub.s32 256, 256
          %182 = vsyncadd %s176, %s181
          %s183 = smul.addr %s23, 2
          %s184 = smul.addr %s183, 128
          %s185 = scalar_lea.hbm %s0, %s184
          %s186 = sshll.u32 %s179, 4
          %s187 = int_to_ptr.vmem [resolvable:$true] %s186
          %192 = dma.hbm_to_vmem [thread:$0]  %s185, 256, %s187, %s176, 128, 128, 8
        $region20: #{tpu_custom_call.1} parent=15 // pred_fallthru
          _
        // Predicated region
        $region21: #{tpu_custom_call.1} parent=15 // pred_check
          %p193 = pneg %p69
        $region22: #{tpu_custom_call.1} parent=15 // pred_check_branch
          %195 = sbr.rel (%p193) target = $region24
        $region23: #{tpu_custom_call.1} parent=15 // pred_region
          %s196 = sand.u32 %s23, 1
          %s197 = scalar_lea.sflag [#allocation6], %s196
          %s198 = sand.u32 %s59, 1
          %s199 = smul.addr %s198, 16
          %s200 = scalar_lea.vmem [#allocation5], %s199
          %s202 = ssub.s32 256, 256
          %203 = vsyncadd %s197, %s202
          %s204 = smul.addr %s23, 2
          %s205 = smul.addr %s204, 128
          %s206 = scalar_lea.hbm %s1, %s205
          %s207 = sshll.u32 %s200, 4
          %s208 = int_to_ptr.vmem [resolvable:$true] %s207
          %213 = dma.hbm_to_vmem [thread:$0]  %s206, 256, %s208, %s197, 128, 128, 8
        $region24: #{tpu_custom_call.1} parent=15 // pred_fallthru
          _
        // Predicated region
        $region25: #{tpu_custom_call.1} parent=15 // pred_check
          %p214 = pneg %p95
        $region26: #{tpu_custom_call.1} parent=15 // pred_check_branch
          %216 = sbr.rel (%p214) target = $region28
        $region27: #{tpu_custom_call.1} parent=15 // pred_region
          %s217 = sand.u32 %s23, 1
          %s218 = scalar_lea.sflag [#allocation6], %s217
          %s219 = sand.u32 %s85, 1
          %s220 = smul.addr %s219, 16
          %s221 = scalar_lea.vmem [#allocation7], %s220
          %s223 = ssub.s32 256, 256
          %224 = vsyncadd %s218, %s223
          %s225 = smul.addr %s23, 2
          %s226 = smul.addr %s225, 128
          %s227 = scalar_lea.hbm %s2, %s226
          %s228 = sshll.u32 %s221, 4
          %s229 = int_to_ptr.vmem [resolvable:$true] %s228
          %234 = dma.hbm_to_vmem [thread:$0]  %s227, 256, %s229, %s218, 128, 128, 8
        $region28: #{tpu_custom_call.1} parent=15 // pred_fallthru
          _
      $region16: #{tpu_custom_call.1} parent=5 // pred_fallthru
        _
      %p235 = scmp.le.s32.totalorder 1, %s23
      %p236 = scmp.lt.s32.totalorder %s23, 9
      %p237 = pnand %p235, %p236
      %p238 = pneg %p237
      // Predicated region
      $region29: #{tpu_custom_call.1} parent=5 // pred_check
        _
      $region30: #{tpu_custom_call.1} parent=5 // pred_check_branch
        %240 = sbr.rel (%p237) target = $region32
      $region31: #{tpu_custom_call.1} parent=5 // pred_region
        %s241 = ssub.s32 %s23, 1
        %s242 = sand.u32 %s36, 1
        %s243 = scalar_lea.sflag [#allocation3], %s242
        %s244 = sand.u32 %s36, 1
        %s245 = smul.addr %s244, 16
        %s246 = scalar_lea.vmem [#allocation2], %s245
        // Predicated region
        $region33: #{tpu_custom_call.1} parent=31 // pred_check
          %p247 = pneg %p49
        $region34: #{tpu_custom_call.1} parent=31 // pred_check_branch
          %249 = sbr.rel (%p247) target = $region36
        $region35: #{tpu_custom_call.1} parent=31 // pred_region
          %250 = dma.done %s243, 256
        $region36: #{tpu_custom_call.1} parent=31 // pred_fallthru
          _
        %s251 = sand.u32 %s28, 1
        %s252 = scalar_lea.sflag [#allocation6], %s251
        %s253 = sand.u32 %s62, 1
        %s254 = smul.addr %s253, 16
        %s255 = scalar_lea.vmem [#allocation5], %s254
        // Predicated region
        $region37: #{tpu_custom_call.1} parent=31 // pred_check
          %p256 = pneg %p75
        $region38: #{tpu_custom_call.1} parent=31 // pred_check_branch
          %258 = sbr.rel (%p256) target = $region40
        $region39: #{tpu_custom_call.1} parent=31 // pred_region
          %259 = dma.done %s252, 256
        $region40: #{tpu_custom_call.1} parent=31 // pred_fallthru
          _
        %s260 = sand.u32 %s28, 1
        %s261 = scalar_lea.sflag [#allocation6], %s260
        %s262 = sand.u32 %s88, 1
        %s263 = smul.addr %s262, 16
        %s264 = scalar_lea.vmem [#allocation7], %s263
        // Predicated region
        $region41: #{tpu_custom_call.1} parent=31 // pred_check
          %p265 = pneg %p101
        $region42: #{tpu_custom_call.1} parent=31 // pred_check_branch
          %267 = sbr.rel (%p265) target = $region44
        $region43: #{tpu_custom_call.1} parent=31 // pred_region
          %268 = dma.done %s261, 256
        $region44: #{tpu_custom_call.1} parent=31 // pred_fallthru
          _
        %s269 = sand.u32 %s36, 1
        %s270 = scalar_lea.sflag [#allocation3], %s269
        %s271 = sand.u32 %s36, 1
        %s272 = smul.addr %s271, 16
        %s273 = scalar_lea.vmem [#allocation2], %s272
        %p274 = pneg %p49
        %p275 = pneg %p46
        %s276 = sand.u32 %s28, 1
        %s277 = scalar_lea.sflag [#allocation6], %s276
        %s278 = sand.u32 %s62, 1
        %s279 = smul.addr %s278, 16
        %s280 = scalar_lea.vmem [#allocation5], %s279
        %p281 = pneg %p75
        %p282 = pneg %p72
        %s283 = sand.u32 %s28, 1
        %s284 = scalar_lea.sflag [#allocation6], %s283
        %s285 = sand.u32 %s88, 1
        %s286 = smul.addr %s285, 16
        %s287 = scalar_lea.vmem [#allocation7], %s286
        %p288 = pneg %p101
        %p289 = pneg %p98
        %p290 = pneg %p127
        %p291 = pneg %p124
        %s292 = sand.u32 %s114, 1
        %s293 = scalar_lea.sflag [#allocation4], %s292
        %s294 = sand.u32 %s114, 1
        %s295 = smul.addr %s294, 16
        %s296 = scalar_lea.vmem [#allocation8], %s295
        %p297 = pneg %p153
        %p298 = pneg %p150
        %s299 = sand.u32 %s140, 1
        %s300 = scalar_lea.sflag [#allocation10], %s299
        %s301 = sand.u32 %s140, 1
        %s302 = smul.addr %s301, 16
        %s303 = scalar_lea.vmem [#allocation9], %s302
        %v304 = vld [vmem:[%s246] sm:$0xff]
        %v305 = vld [vmem:[%s246 + $0x8] sm:$0xff]
        %v306 = vld [vmem:[%s255] sm:$0xff]
        %v307 = vld [vmem:[%s255 + $0x8] sm:$0xff]
        %v308 = vld [vmem:[%s264] sm:$0xff]
        %v309 = vld [vmem:[%s264 + $0x8] sm:$0xff]
        %v310 = vmul.f32 %v304, 0.125
        %v311 = vmul.f32 %v305, 0.125
        %vm312 = vcmask 523264
        %v314 = vsel %vm312, %v310, 0
        %v317 = vsel %vm312, %v311, 0
        %v320 = vsel %vm312, %v306, 0
        %v323 = vsel %vm312, %v307, 0
        %325 = vmatprep.subr.mxu0 0.0
        %326 = vmatpush1.xpose.msra.mxu0 0.0
        %327 = vmatprep.subr.mxu0 0.0
        %328 = vmatpush1.xpose.msra.mxu0 0.0
        %329 = vmatprep.subr.mxu0 0.0
        %330 = vmatpush1.xpose.msra.mxu0 0.0
        %331 = vmatprep.subr.mxu0 0.0
        %332 = vmatpush1.xpose.msra.mxu0 0.0
        %333 = vmatprep.subr.mxu0 0.0
        %334 = vmatpush1.xpose.msra.mxu0 0.0
        %335 = vmatprep.subr.mxu0 0.0
        %336 = vmatpush1.xpose.msra.mxu0 0.0
        %337 = vmatprep.subr.mxu0 0.0
        %338 = vmatpush1.xpose.msra.mxu0 0.0
        %339 = vmatprep.subr.mxu0 0.0
        %340 = vmatpush1.xpose.msra.mxu0 0.0
        %341 = vmatprep.subr.mxu0 0.0
        %342 = vmatpush1.xpose.msra.mxu0 0.0
        %343 = vmatprep.subr.mxu0 0.0
        %344 = vmatpush1.xpose.msra.mxu0 0.0
        %345 = vmatprep.subr.mxu0 0.0
        %346 = vmatpush1.xpose.msra.mxu0 0.0
        %347 = vmatprep.subr.mxu0 0.0
        %348 = vmatpush1.xpose.msra.mxu0 0.0
        %349 = vmatprep.subr.mxu0 0.0
        %350 = vmatpush1.xpose.msra.mxu0 0.0
        %351 = vmatprep.subr.mxu0 0.0
        %352 = vmatpush1.xpose.msra.mxu0 0.0
        %353 = vmatprep.subr.mxu0 0.0
        %v354 = vand.u32 %v323, 4294901760
        %355 = vmatpush1.xpose.msra.mxu0 %v354
        %356 = vmatprep.subr.mxu0 0.0
        %v357 = vand.u32 %v320, 4294901760
        %358 = vmatpush1.xpose.msra.mxu0 %v357
        %359 = vmatprep.subr.mxu0 0.0
        %360 = vmatpush2.xpose.msra.mxu0 0.0
        %361 = vmatprep.subr.mxu0 0.0
        %362 = vmatpush2.xpose.msra.mxu0 0.0
        %363 = vmatprep.subr.mxu0 0.0
        %364 = vmatpush2.xpose.msra.mxu0 0.0
        %365 = vmatprep.subr.mxu0 0.0
        %366 = vmatpush2.xpose.msra.mxu0 0.0
        %367 = vmatprep.subr.mxu0 0.0
        %368 = vmatpush2.xpose.msra.mxu0 0.0
        %369 = vmatprep.subr.mxu0 0.0
        %370 = vmatpush2.xpose.msra.mxu0 0.0
        %371 = vmatprep.subr.mxu0 0.0
        %372 = vmatpush2.xpose.msra.mxu0 0.0
        %373 = vmatprep.subr.mxu0 0.0
        %374 = vmatpush2.xpose.msra.mxu0 0.0
        %375 = vmatprep.subr.mxu0 0.0
        %376 = vmatpush2.xpose.msra.mxu0 0.0
        %377 = vmatprep.subr.mxu0 0.0
        %378 = vmatpush2.xpose.msra.mxu0 0.0
        %379 = vmatprep.subr.mxu0 0.0
        %380 = vmatpush2.xpose.msra.mxu0 0.0
        %381 = vmatprep.subr.mxu0 0.0
        %382 = vmatpush2.xpose.msra.mxu0 0.0
        %383 = vmatprep.subr.mxu0 0.0
        %384 = vmatpush2.xpose.msra.mxu0 0.0
        %385 = vmatprep.subr.mxu0 0.0
        %386 = vmatpush2.xpose.msra.mxu0 0.0
        %387 = vmatprep.subr.mxu0 0.0
        %388 = vmatpush2.xpose.msra.mxu0 0.0
        %389 = vmatprep.subr.mxu0 0.0
        %390 = vmatpush2.xpose.msra.mxu0 0.0
        %391 = vmatprep.mubr.f32.mxu0 0.0
        %v392 = vand.u32 %v314, 4294901760
        %v393 = vsub.f32 %v314, %v392
        %v394 = vand.u32 %v393, 4294901760
        %v395 = vsub.f32 %v393, %v394
        %v396 = vand.u32 %v395, 4294901760
        %397 = vmatmul.mubr.f32.gmra.mxu0 %v396
        %v398 = vpop.f32.mrf.mxu0
        %v399 = vadd.f32 0.0, %v398
        %v400 = vpop.f32.mrf.mxu0
        %401 = vmatprep.mubr.f32.mxu0 0.0
        %v402 = vand.u32 %v317, 4294901760
        %v403 = vsub.f32 %v317, %v402
        %v404 = vand.u32 %v403, 4294901760
        %v405 = vsub.f32 %v403, %v404
        %v406 = vand.u32 %v405, 4294901760
        %407 = vmatmul.mubr.f32.gmra.mxu0 %v406
        %v408 = vpop.f32.mrf.mxu0
        %v409 = vadd.f32 0.0, %v408
        %v410 = vpop.f32.mrf.mxu0
        %411 = vdwg.mxu0
        %412 = vmatprep.subr.mxu0 0.0
        %413 = vmatpush1.xpose.msra.mxu0 0.0
        %414 = vmatprep.subr.mxu0 0.0
        %415 = vmatpush1.xpose.msra.mxu0 0.0
        %416 = vmatprep.subr.mxu0 0.0
        %417 = vmatpush1.xpose.msra.mxu0 0.0
        %418 = vmatprep.subr.mxu0 0.0
        %419 = vmatpush1.xpose.msra.mxu0 0.0
        %420 = vmatprep.subr.mxu0 0.0
        %421 = vmatpush1.xpose.msra.mxu0 0.0
        %422 = vmatprep.subr.mxu0 0.0
        %423 = vmatpush1.xpose.msra.mxu0 0.0
        %424 = vmatprep.subr.mxu0 0.0
        %425 = vmatpush1.xpose.msra.mxu0 0.0
        %426 = vmatprep.subr.mxu0 0.0
        %427 = vmatpush1.xpose.msra.mxu0 0.0
        %428 = vmatprep.subr.mxu0 0.0
        %429 = vmatpush1.xpose.msra.mxu0 0.0
        %430 = vmatprep.subr.mxu0 0.0
        %431 = vmatpush1.xpose.msra.mxu0 0.0
        %432 = vmatprep.subr.mxu0 0.0
        %433 = vmatpush1.xpose.msra.mxu0 0.0
        %434 = vmatprep.subr.mxu0 0.0
        %435 = vmatpush1.xpose.msra.mxu0 0.0
        %436 = vmatprep.subr.mxu0 0.0
        %437 = vmatpush1.xpose.msra.mxu0 0.0
        %438 = vmatprep.subr.mxu0 0.0
        %439 = vmatpush1.xpose.msra.mxu0 0.0
        %440 = vmatprep.subr.mxu0 0.0
        %v441 = vand.u32 %v323, 4294901760
        %v442 = vsub.f32 %v323, %v441
        %v443 = vand.u32 %v442, 4294901760
        %v444 = vsub.f32 %v442, %v443
        %v445 = vand.u32 %v444, 4294901760
        %446 = vmatpush1.xpose.msra.mxu0 %v445
        %447 = vmatprep.subr.mxu0 0.0
        %v448 = vand.u32 %v320, 4294901760
        %v449 = vsub.f32 %v320, %v448
        %v450 = vand.u32 %v449, 4294901760
        %v451 = vsub.f32 %v449, %v450
        %v452 = vand.u32 %v451, 4294901760
        %453 = vmatpush1.xpose.msra.mxu0 %v452
        %454 = vmatprep.subr.mxu0 0.0
        %455 = vmatpush2.xpose.msra.mxu0 0.0
        %456 = vmatprep.subr.mxu0 0.0
        %457 = vmatpush2.xpose.msra.mxu0 0.0
        %458 = vmatprep.subr.mxu0 0.0
        %459 = vmatpush2.xpose.msra.mxu0 0.0
        %460 = vmatprep.subr.mxu0 0.0
        %461 = vmatpush2.xpose.msra.mxu0 0.0
        %462 = vmatprep.subr.mxu0 0.0
        %463 = vmatpush2.xpose.msra.mxu0 0.0
        %464 = vmatprep.subr.mxu0 0.0
        %465 = vmatpush2.xpose.msra.mxu0 0.0
        %466 = vmatprep.subr.mxu0 0.0
        %467 = vmatpush2.xpose.msra.mxu0 0.0
        %468 = vmatprep.subr.mxu0 0.0
        %469 = vmatpush2.xpose.msra.mxu0 0.0
        %470 = vmatprep.subr.mxu0 0.0
        %471 = vmatpush2.xpose.msra.mxu0 0.0
        %472 = vmatprep.subr.mxu0 0.0
        %473 = vmatpush2.xpose.msra.mxu0 0.0
        %474 = vmatprep.subr.mxu0 0.0
        %475 = vmatpush2.xpose.msra.mxu0 0.0
        %476 = vmatprep.subr.mxu0 0.0
        %477 = vmatpush2.xpose.msra.mxu0 0.0
        %478 = vmatprep.subr.mxu0 0.0
        %479 = vmatpush2.xpose.msra.mxu0 0.0
        %480 = vmatprep.subr.mxu0 0.0
        %481 = vmatpush2.xpose.msra.mxu0 0.0
        %482 = vmatprep.subr.mxu0 0.0
        %483 = vmatpush2.xpose.msra.mxu0 0.0
        %484 = vmatprep.subr.mxu0 0.0
        %485 = vmatpush2.xpose.msra.mxu0 0.0
        %486 = vmatprep.mubr.f32.mxu0 0.0
        %v487 = vand.u32 %v314, 4294901760
        %488 = vmatmul.mubr.f32.gmra.mxu0 %v487
        %v489 = vpop.f32.mrf.mxu0
        %v490 = vadd.f32 %v399, %v489
        %v491 = vpop.f32.mrf.mxu0
        %492 = vmatprep.mubr.f32.mxu0 0.0
        %v493 = vand.u32 %v317, 4294901760
        %494 = vmatmul.mubr.f32.gmra.mxu0 %v493
        %v495 = vpop.f32.mrf.mxu0
        %v496 = vadd.f32 %v409, %v495
        %v497 = vpop.f32.mrf.mxu0
        %498 = vdwg.mxu0
        %499 = vmatprep.subr.mxu0 0.0
        %500 = vmatpush1.xpose.msra.mxu0 0.0
        %501 = vmatprep.subr.mxu0 0.0
        %502 = vmatpush1.xpose.msra.mxu0 0.0
        %503 = vmatprep.subr.mxu0 0.0
        %504 = vmatpush1.xpose.msra.mxu0 0.0
        %505 = vmatprep.subr.mxu0 0.0
        %506 = vmatpush1.xpose.msra.mxu0 0.0
        %507 = vmatprep.subr.mxu0 0.0
        %508 = vmatpush1.xpose.msra.mxu0 0.0
        %509 = vmatprep.subr.mxu0 0.0
        %510 = vmatpush1.xpose.msra.mxu0 0.0
        %511 = vmatprep.subr.mxu0 0.0
        %512 = vmatpush1.xpose.msra.mxu0 0.0
        %513 = vmatprep.subr.mxu0 0.0
        %514 = vmatpush1.xpose.msra.mxu0 0.0
        %515 = vmatprep.subr.mxu0 0.0
        %516 = vmatpush1.xpose.msra.mxu0 0.0
        %517 = vmatprep.subr.mxu0 0.0
        %518 = vmatpush1.xpose.msra.mxu0 0.0
        %519 = vmatprep.subr.mxu0 0.0
        %520 = vmatpush1.xpose.msra.mxu0 0.0
        %521 = vmatprep.subr.mxu0 0.0
        %522 = vmatpush1.xpose.msra.mxu0 0.0
        %523 = vmatprep.subr.mxu0 0.0
        %524 = vmatpush1.xpose.msra.mxu0 0.0
        %525 = vmatprep.subr.mxu0 0.0
        %526 = vmatpush1.xpose.msra.mxu0 0.0
        %527 = vmatprep.subr.mxu0 0.0
        %v528 = vand.u32 %v323, 4294901760
        %v529 = vsub.f32 %v323, %v528
        %530 = vmatpush1.xpose.msra.mxu0 %v529
        %531 = vmatprep.subr.mxu0 0.0
        %v532 = vand.u32 %v320, 4294901760
        %v533 = vsub.f32 %v320, %v532
        %534 = vmatpush1.xpose.msra.mxu0 %v533
        %535 = vmatprep.subr.mxu0 0.0
        %536 = vmatpush2.xpose.msra.mxu0 0.0
        %537 = vmatprep.subr.mxu0 0.0
        %538 = vmatpush2.xpose.msra.mxu0 0.0
        %539 = vmatprep.subr.mxu0 0.0
        %540 = vmatpush2.xpose.msra.mxu0 0.0
        %541 = vmatprep.subr.mxu0 0.0
        %542 = vmatpush2.xpose.msra.mxu0 0.0
        %543 = vmatprep.subr.mxu0 0.0
        %544 = vmatpush2.xpose.msra.mxu0 0.0
        %545 = vmatprep.subr.mxu0 0.0
        %546 = vmatpush2.xpose.msra.mxu0 0.0
        %547 = vmatprep.subr.mxu0 0.0
        %548 = vmatpush2.xpose.msra.mxu0 0.0
        %549 = vmatprep.subr.mxu0 0.0
        %550 = vmatpush2.xpose.msra.mxu0 0.0
        %551 = vmatprep.subr.mxu0 0.0
        %552 = vmatpush2.xpose.msra.mxu0 0.0
        %553 = vmatprep.subr.mxu0 0.0
        %554 = vmatpush2.xpose.msra.mxu0 0.0
        %555 = vmatprep.subr.mxu0 0.0
        %556 = vmatpush2.xpose.msra.mxu0 0.0
        %557 = vmatprep.subr.mxu0 0.0
        %558 = vmatpush2.xpose.msra.mxu0 0.0
        %559 = vmatprep.subr.mxu0 0.0
        %560 = vmatpush2.xpose.msra.mxu0 0.0
        %561 = vmatprep.subr.mxu0 0.0
        %562 = vmatpush2.xpose.msra.mxu0 0.0
        %563 = vmatprep.subr.mxu0 0.0
        %564 = vmatpush2.xpose.msra.mxu0 0.0
        %565 = vmatprep.subr.mxu0 0.0
        %566 = vmatpush2.xpose.msra.mxu0 0.0
        %567 = vmatprep.mubr.f32.mxu0 0.0
        %v568 = vand.u32 %v314, 4294901760
        %v569 = vsub.f32 %v314, %v568
        %570 = vmatmul.mubr.f32.gmra.mxu0 %v569
        %v571 = vpop.f32.mrf.mxu0
        %v572 = vadd.f32 %v490, %v571
        %v573 = vpop.f32.mrf.mxu0
        %574 = vmatprep.mubr.f32.mxu0 0.0
        %v575 = vand.u32 %v317, 4294901760
        %v576 = vsub.f32 %v317, %v575
        %577 = vmatmul.mubr.f32.gmra.mxu0 %v576
        %v578 = vpop.f32.mrf.mxu0
        %v579 = vadd.f32 %v496, %v578
        %v580 = vpop.f32.mrf.mxu0
        %581 = vdwg.mxu0
        %582 = vmatprep.subr.mxu0 0.0
        %583 = vmatpush1.xpose.msra.mxu0 0.0
        %584 = vmatprep.subr.mxu0 0.0
        %585 = vmatpush1.xpose.msra.mxu0 0.0
        %586 = vmatprep.subr.mxu0 0.0
        %587 = vmatpush1.xpose.msra.mxu0 0.0
        %588 = vmatprep.subr.mxu0 0.0
        %589 = vmatpush1.xpose.msra.mxu0 0.0
        %590 = vmatprep.subr.mxu0 0.0
        %591 = vmatpush1.xpose.msra.mxu0 0.0
        %592 = vmatprep.subr.mxu0 0.0
        %593 = vmatpush1.xpose.msra.mxu0 0.0
        %594 = vmatprep.subr.mxu0 0.0
        %595 = vmatpush1.xpose.msra.mxu0 0.0
        %596 = vmatprep.subr.mxu0 0.0
        %597 = vmatpush1.xpose.msra.mxu0 0.0
        %598 = vmatprep.subr.mxu0 0.0
        %599 = vmatpush1.xpose.msra.mxu0 0.0
        %600 = vmatprep.subr.mxu0 0.0
        %601 = vmatpush1.xpose.msra.mxu0 0.0
        %602 = vmatprep.subr.mxu0 0.0
        %603 = vmatpush1.xpose.msra.mxu0 0.0
        %604 = vmatprep.subr.mxu0 0.0
        %605 = vmatpush1.xpose.msra.mxu0 0.0
        %606 = vmatprep.subr.mxu0 0.0
        %607 = vmatpush1.xpose.msra.mxu0 0.0
        %608 = vmatprep.subr.mxu0 0.0
        %609 = vmatpush1.xpose.msra.mxu0 0.0
        %610 = vmatprep.subr.mxu0 0.0
        %v611 = vand.u32 %v323, 4294901760
        %612 = vmatpush1.xpose.msra.mxu0 %v611
        %613 = vmatprep.subr.mxu0 0.0
        %v614 = vand.u32 %v320, 4294901760
        %615 = vmatpush1.xpose.msra.mxu0 %v614
        %616 = vmatprep.subr.mxu0 0.0
        %617 = vmatpush2.xpose.msra.mxu0 0.0
        %618 = vmatprep.subr.mxu0 0.0
        %619 = vmatpush2.xpose.msra.mxu0 0.0
        %620 = vmatprep.subr.mxu0 0.0
        %621 = vmatpush2.xpose.msra.mxu0 0.0
        %622 = vmatprep.subr.mxu0 0.0
        %623 = vmatpush2.xpose.msra.mxu0 0.0
        %624 = vmatprep.subr.mxu0 0.0
        %625 = vmatpush2.xpose.msra.mxu0 0.0
        %626 = vmatprep.subr.mxu0 0.0
        %627 = vmatpush2.xpose.msra.mxu0 0.0
        %628 = vmatprep.subr.mxu0 0.0
        %629 = vmatpush2.xpose.msra.mxu0 0.0
        %630 = vmatprep.subr.mxu0 0.0
        %631 = vmatpush2.xpose.msra.mxu0 0.0
        %632 = vmatprep.subr.mxu0 0.0
        %633 = vmatpush2.xpose.msra.mxu0 0.0
        %634 = vmatprep.subr.mxu0 0.0
        %635 = vmatpush2.xpose.msra.mxu0 0.0
        %636 = vmatprep.subr.mxu0 0.0
        %637 = vmatpush2.xpose.msra.mxu0 0.0
        %638 = vmatprep.subr.mxu0 0.0
        %639 = vmatpush2.xpose.msra.mxu0 0.0
        %640 = vmatprep.subr.mxu0 0.0
        %641 = vmatpush2.xpose.msra.mxu0 0.0
        %642 = vmatprep.subr.mxu0 0.0
        %643 = vmatpush2.xpose.msra.mxu0 0.0
        %644 = vmatprep.subr.mxu0 0.0
        %645 = vmatpush2.xpose.msra.mxu0 0.0
        %646 = vmatprep.subr.mxu0 0.0
        %647 = vmatpush2.xpose.msra.mxu0 0.0
        %648 = vmatprep.mubr.f32.mxu0 0.0
        %v649 = vand.u32 %v314, 4294901760
        %v650 = vsub.f32 %v314, %v649
        %v651 = vand.u32 %v650, 4294901760
        %652 = vmatmul.mubr.f32.gmra.mxu0 %v651
        %v653 = vpop.f32.mrf.mxu0
        %v654 = vadd.f32 %v572, %v653
        %v655 = vpop.f32.mrf.mxu0
        %656 = vmatprep.mubr.f32.mxu0 0.0
        %v657 = vand.u32 %v317, 4294901760
        %v658 = vsub.f32 %v317, %v657
        %v659 = vand.u32 %v658, 4294901760
        %660 = vmatmul.mubr.f32.gmra.mxu0 %v659
        %v661 = vpop.f32.mrf.mxu0
        %v662 = vadd.f32 %v579, %v661
        %v663 = vpop.f32.mrf.mxu0
        %664 = vdwg.mxu0
        %665 = vmatprep.subr.mxu0 0.0
        %666 = vmatpush1.xpose.msra.mxu0 0.0
        %667 = vmatprep.subr.mxu0 0.0
        %668 = vmatpush1.xpose.msra.mxu0 0.0
        %669 = vmatprep.subr.mxu0 0.0
        %670 = vmatpush1.xpose.msra.mxu0 0.0
        %671 = vmatprep.subr.mxu0 0.0
        %672 = vmatpush1.xpose.msra.mxu0 0.0
        %673 = vmatprep.subr.mxu0 0.0
        %674 = vmatpush1.xpose.msra.mxu0 0.0
        %675 = vmatprep.subr.mxu0 0.0
        %676 = vmatpush1.xpose.msra.mxu0 0.0
        %677 = vmatprep.subr.mxu0 0.0
        %678 = vmatpush1.xpose.msra.mxu0 0.0
        %679 = vmatprep.subr.mxu0 0.0
        %680 = vmatpush1.xpose.msra.mxu0 0.0
        %681 = vmatprep.subr.mxu0 0.0
        %682 = vmatpush1.xpose.msra.mxu0 0.0
        %683 = vmatprep.subr.mxu0 0.0
        %684 = vmatpush1.xpose.msra.mxu0 0.0
        %685 = vmatprep.subr.mxu0 0.0
        %686 = vmatpush1.xpose.msra.mxu0 0.0
        %687 = vmatprep.subr.mxu0 0.0
        %688 = vmatpush1.xpose.msra.mxu0 0.0
        %689 = vmatprep.subr.mxu0 0.0
        %690 = vmatpush1.xpose.msra.mxu0 0.0
        %691 = vmatprep.subr.mxu0 0.0
        %692 = vmatpush1.xpose.msra.mxu0 0.0
        %693 = vmatprep.subr.mxu0 0.0
        %v694 = vand.u32 %v323, 4294901760
        %v695 = vsub.f32 %v323, %v694
        %v696 = vand.u32 %v695, 4294901760
        %697 = vmatpush1.xpose.msra.mxu0 %v696
        %698 = vmatprep.subr.mxu0 0.0
        %v699 = vand.u32 %v320, 4294901760
        %v700 = vsub.f32 %v320, %v699
        %v701 = vand.u32 %v700, 4294901760
        %702 = vmatpush1.xpose.msra.mxu0 %v701
        %703 = vmatprep.subr.mxu0 0.0
        %704 = vmatpush2.xpose.msra.mxu0 0.0
        %705 = vmatprep.subr.mxu0 0.0
        %706 = vmatpush2.xpose.msra.mxu0 0.0
        %707 = vmatprep.subr.mxu0 0.0
        %708 = vmatpush2.xpose.msra.mxu0 0.0
        %709 = vmatprep.subr.mxu0 0.0
        %710 = vmatpush2.xpose.msra.mxu0 0.0
        %711 = vmatprep.subr.mxu0 0.0
        %712 = vmatpush2.xpose.msra.mxu0 0.0
        %713 = vmatprep.subr.mxu0 0.0
        %714 = vmatpush2.xpose.msra.mxu0 0.0
        %715 = vmatprep.subr.mxu0 0.0
        %716 = vmatpush2.xpose.msra.mxu0 0.0
        %717 = vmatprep.subr.mxu0 0.0
        %718 = vmatpush2.xpose.msra.mxu0 0.0
        %719 = vmatprep.subr.mxu0 0.0
        %720 = vmatpush2.xpose.msra.mxu0 0.0
        %721 = vmatprep.subr.mxu0 0.0
        %722 = vmatpush2.xpose.msra.mxu0 0.0
        %723 = vmatprep.subr.mxu0 0.0
        %724 = vmatpush2.xpose.msra.mxu0 0.0
        %725 = vmatprep.subr.mxu0 0.0
        %726 = vmatpush2.xpose.msra.mxu0 0.0
        %727 = vmatprep.subr.mxu0 0.0
        %728 = vmatpush2.xpose.msra.mxu0 0.0
        %729 = vmatprep.subr.mxu0 0.0
        %730 = vmatpush2.xpose.msra.mxu0 0.0
        %731 = vmatprep.subr.mxu0 0.0
        %732 = vmatpush2.xpose.msra.mxu0 0.0
        %733 = vmatprep.subr.mxu0 0.0
        %734 = vmatpush2.xpose.msra.mxu0 0.0
        %735 = vmatprep.mubr.f32.mxu0 0.0
        %v736 = vand.u32 %v314, 4294901760
        %737 = vmatmul.mubr.f32.gmra.mxu0 %v736
        %v738 = vpop.f32.mrf.mxu0
        %v739 = vadd.f32 %v654, %v738
        %v740 = vpop.f32.mrf.mxu0
        %741 = vmatprep.mubr.f32.mxu0 0.0
        %v742 = vand.u32 %v317, 4294901760
        %743 = vmatmul.mubr.f32.gmra.mxu0 %v742
        %v744 = vpop.f32.mrf.mxu0
        %v745 = vadd.f32 %v662, %v744
        %v746 = vpop.f32.mrf.mxu0
        %747 = vdwg.mxu0
        %748 = vmatprep.subr.mxu0 0.0
        %749 = vmatpush1.xpose.msra.mxu0 0.0
        %750 = vmatprep.subr.mxu0 0.0
        %751 = vmatpush1.xpose.msra.mxu0 0.0
        %752 = vmatprep.subr.mxu0 0.0
        %753 = vmatpush1.xpose.msra.mxu0 0.0
        %754 = vmatprep.subr.mxu0 0.0
        %755 = vmatpush1.xpose.msra.mxu0 0.0
        %756 = vmatprep.subr.mxu0 0.0
        %757 = vmatpush1.xpose.msra.mxu0 0.0
        %758 = vmatprep.subr.mxu0 0.0
        %759 = vmatpush1.xpose.msra.mxu0 0.0
        %760 = vmatprep.subr.mxu0 0.0
        %761 = vmatpush1.xpose.msra.mxu0 0.0
        %762 = vmatprep.subr.mxu0 0.0
        %763 = vmatpush1.xpose.msra.mxu0 0.0
        %764 = vmatprep.subr.mxu0 0.0
        %765 = vmatpush1.xpose.msra.mxu0 0.0
        %766 = vmatprep.subr.mxu0 0.0
        %767 = vmatpush1.xpose.msra.mxu0 0.0
        %768 = vmatprep.subr.mxu0 0.0
        %769 = vmatpush1.xpose.msra.mxu0 0.0
        %770 = vmatprep.subr.mxu0 0.0
        %771 = vmatpush1.xpose.msra.mxu0 0.0
        %772 = vmatprep.subr.mxu0 0.0
        %773 = vmatpush1.xpose.msra.mxu0 0.0
        %774 = vmatprep.subr.mxu0 0.0
        %775 = vmatpush1.xpose.msra.mxu0 0.0
        %776 = vmatprep.subr.mxu0 0.0
        %v777 = vand.u32 %v323, 4294901760
        %778 = vmatpush1.xpose.msra.mxu0 %v777
        %779 = vmatprep.subr.mxu0 0.0
        %v780 = vand.u32 %v320, 4294901760
        %781 = vmatpush1.xpose.msra.mxu0 %v780
        %782 = vmatprep.subr.mxu0 0.0
        %783 = vmatpush2.xpose.msra.mxu0 0.0
        %784 = vmatprep.subr.mxu0 0.0
        %785 = vmatpush2.xpose.msra.mxu0 0.0
        %786 = vmatprep.subr.mxu0 0.0
        %787 = vmatpush2.xpose.msra.mxu0 0.0
        %788 = vmatprep.subr.mxu0 0.0
        %789 = vmatpush2.xpose.msra.mxu0 0.0
        %790 = vmatprep.subr.mxu0 0.0
        %791 = vmatpush2.xpose.msra.mxu0 0.0
        %792 = vmatprep.subr.mxu0 0.0
        %793 = vmatpush2.xpose.msra.mxu0 0.0
        %794 = vmatprep.subr.mxu0 0.0
        %795 = vmatpush2.xpose.msra.mxu0 0.0
        %796 = vmatprep.subr.mxu0 0.0
        %797 = vmatpush2.xpose.msra.mxu0 0.0
        %798 = vmatprep.subr.mxu0 0.0
        %799 = vmatpush2.xpose.msra.mxu0 0.0
        %800 = vmatprep.subr.mxu0 0.0
        %801 = vmatpush2.xpose.msra.mxu0 0.0
        %802 = vmatprep.subr.mxu0 0.0
        %803 = vmatpush2.xpose.msra.mxu0 0.0
        %804 = vmatprep.subr.mxu0 0.0
        %805 = vmatpush2.xpose.msra.mxu0 0.0
        %806 = vmatprep.subr.mxu0 0.0
        %807 = vmatpush2.xpose.msra.mxu0 0.0
        %808 = vmatprep.subr.mxu0 0.0
        %809 = vmatpush2.xpose.msra.mxu0 0.0
        %810 = vmatprep.subr.mxu0 0.0
        %811 = vmatpush2.xpose.msra.mxu0 0.0
        %812 = vmatprep.subr.mxu0 0.0
        %813 = vmatpush2.xpose.msra.mxu0 0.0
        %814 = vmatprep.mubr.f32.mxu0 0.0
        %v815 = vand.u32 %v314, 4294901760
        %816 = vmatmul.mubr.f32.gmra.mxu0 %v815
        %v817 = vpop.f32.mrf.mxu0
        %v818 = vadd.f32 %v739, %v817
        %v819 = vpop.f32.mrf.mxu0
        %820 = vmatprep.mubr.f32.mxu0 0.0
        %v821 = vand.u32 %v317, 4294901760
        %822 = vmatmul.mubr.f32.gmra.mxu0 %v821
        %v823 = vpop.f32.mrf.mxu0
        %v824 = vadd.f32 %v745, %v823
        %v825 = vpop.f32.mrf.mxu0
        %826 = vdwg.mxu0
        %vm827 = vcmask 130048
        %v828 = vsel %vm827, %v818, -inf
        %829 = vmax.xlane.f32.xlu0 %v828
        %v830 = vpop.xlane.xlu0 %829
        %v831 = vsel %vm827, %v824, -inf
        %832 = vmax.xlane.f32.xlu0 %v831
        %v833 = vpop.xlane.xlu0 %832
        %v834 = vsub.f32 %v818, %v830
        %v835 = vsub.f32 %v824, %v833
        %v836 = vmul.f32 %v834, 1.442695
        %v837 = vpow.pop %v836
        %v838 = vmul.f32 %v835, 1.442695
        %v839 = vpow.pop %v838
        %v840 = vsel %vm827, %v837, 0.0
        %841 = vadd.xlane.f32.xlu0 %v840
        %v842 = vpop.xlane.xlu0 %841
        %v843 = vsel %vm827, %v839, 0.0
        %844 = vadd.xlane.f32.xlu0 %v843
        %v845 = vpop.xlane.xlu0 %844
        %v846 = vrcp.pop %v842
        %v847 = vrcp.pop %v845
        %v848 = vmul.f32 %v837, %v846
        %v849 = vmul.f32 %v839, %v847
        %850 = vst.msk [vmem:[%s303] sm:$0xff] %vm827, %v848
        %851 = vst.msk [vmem:[%s303 + $0x8] sm:$0xff] %vm827, %v849
        %v853 = vsel %vm827, %v848, 0
        %v856 = vsel %vm827, %v849, 0
        %858 = vmatprep.subr.mxu0 0.0
        %859 = vmatpush1.msra.mxu0 0.0
        %860 = vmatprep.subr.mxu0 0.0
        %861 = vmatpush1.msra.mxu0 0.0
        %862 = vmatprep.subr.mxu0 0.0
        %863 = vmatpush1.msra.mxu0 0.0
        %864 = vmatprep.subr.mxu0 0.0
        %865 = vmatpush1.msra.mxu0 0.0
        %866 = vmatprep.subr.mxu0 0.0
        %867 = vmatpush1.msra.mxu0 0.0
        %868 = vmatprep.subr.mxu0 0.0
        %869 = vmatpush1.msra.mxu0 0.0
        %870 = vmatprep.subr.mxu0 0.0
        %871 = vmatpush1.msra.mxu0 0.0
        %872 = vmatprep.subr.mxu0 0.0
        %873 = vmatpush1.msra.mxu0 0.0
        %874 = vmatprep.subr.mxu0 0.0
        %875 = vmatpush1.msra.mxu0 0.0
        %876 = vmatprep.subr.mxu0 0.0
        %877 = vmatpush1.msra.mxu0 0.0
        %878 = vmatprep.subr.mxu0 0.0
        %879 = vmatpush1.msra.mxu0 0.0
        %880 = vmatprep.subr.mxu0 0.0
        %881 = vmatpush1.msra.mxu0 0.0
        %882 = vmatprep.subr.mxu0 0.0
        %883 = vmatpush1.msra.mxu0 0.0
        %884 = vmatprep.subr.mxu0 0.0
        %885 = vmatpush1.msra.mxu0 0.0
        %886 = vmatprep.subr.mxu0 0.0
        %v887 = vand.u32 %v309, 4294901760
        %888 = vmatpush1.msra.mxu0 %v887
        %889 = vmatprep.subr.mxu0 0.0
        %v890 = vand.u32 %v308, 4294901760
        %891 = vmatpush1.msra.mxu0 %v890
        %892 = vmatprep.subr.mxu0 0.0
        %893 = vmatpush2.msra.mxu0 0.0
        %894 = vmatprep.subr.mxu0 0.0
        %895 = vmatpush2.msra.mxu0 0.0
        %896 = vmatprep.subr.mxu0 0.0
        %897 = vmatpush2.msra.mxu0 0.0
        %898 = vmatprep.subr.mxu0 0.0
        %899 = vmatpush2.msra.mxu0 0.0
        %900 = vmatprep.subr.mxu0 0.0
        %901 = vmatpush2.msra.mxu0 0.0
        %902 = vmatprep.subr.mxu0 0.0
        %903 = vmatpush2.msra.mxu0 0.0
        %904 = vmatprep.subr.mxu0 0.0
        %905 = vmatpush2.msra.mxu0 0.0
        %906 = vmatprep.subr.mxu0 0.0
        %907 = vmatpush2.msra.mxu0 0.0
        %908 = vmatprep.subr.mxu0 0.0
        %909 = vmatpush2.msra.mxu0 0.0
        %910 = vmatprep.subr.mxu0 0.0
        %911 = vmatpush2.msra.mxu0 0.0
        %912 = vmatprep.subr.mxu0 0.0
        %913 = vmatpush2.msra.mxu0 0.0
        %914 = vmatprep.subr.mxu0 0.0
        %915 = vmatpush2.msra.mxu0 0.0
        %916 = vmatprep.subr.mxu0 0.0
        %917 = vmatpush2.msra.mxu0 0.0
        %918 = vmatprep.subr.mxu0 0.0
        %919 = vmatpush2.msra.mxu0 0.0
        %920 = vmatprep.subr.mxu0 0.0
        %921 = vmatpush2.msra.mxu0 0.0
        %922 = vmatprep.subr.mxu0 0.0
        %923 = vmatpush2.msra.mxu0 0.0
        %924 = vmatprep.mubr.f32.mxu0 0.0
        %v925 = vand.u32 %v853, 4294901760
        %v926 = vsub.f32 %v853, %v925
        %v927 = vand.u32 %v926, 4294901760
        %v928 = vsub.f32 %v926, %v927
        %v929 = vand.u32 %v928, 4294901760
        %930 = vmatmul.mubr.f32.gmra.mxu0 %v929
        %v931 = vpop.f32.mrf.mxu0
        %v932 = vadd.f32 0.0, %v931
        %v933 = vpop.f32.mrf.mxu0
        %934 = vmatprep.mubr.f32.mxu0 0.0
        %v935 = vand.u32 %v856, 4294901760
        %v936 = vsub.f32 %v856, %v935
        %v937 = vand.u32 %v936, 4294901760
        %v938 = vsub.f32 %v936, %v937
        %v939 = vand.u32 %v938, 4294901760
        %940 = vmatmul.mubr.f32.gmra.mxu0 %v939
        %v941 = vpop.f32.mrf.mxu0
        %v942 = vadd.f32 0.0, %v941
        %v943 = vpop.f32.mrf.mxu0
        %944 = vdwg.mxu0
        %945 = vmatprep.subr.mxu0 0.0
        %946 = vmatpush1.msra.mxu0 0.0
        %947 = vmatprep.subr.mxu0 0.0
        %948 = vmatpush1.msra.mxu0 0.0
        %949 = vmatprep.subr.mxu0 0.0
        %950 = vmatpush1.msra.mxu0 0.0
        %951 = vmatprep.subr.mxu0 0.0
        %952 = vmatpush1.msra.mxu0 0.0
        %953 = vmatprep.subr.mxu0 0.0
        %954 = vmatpush1.msra.mxu0 0.0
        %955 = vmatprep.subr.mxu0 0.0
        %956 = vmatpush1.msra.mxu0 0.0
        %957 = vmatprep.subr.mxu0 0.0
        %958 = vmatpush1.msra.mxu0 0.0
        %959 = vmatprep.subr.mxu0 0.0
        %960 = vmatpush1.msra.mxu0 0.0
        %961 = vmatprep.subr.mxu0 0.0
        %962 = vmatpush1.msra.mxu0 0.0
        %963 = vmatprep.subr.mxu0 0.0
        %964 = vmatpush1.msra.mxu0 0.0
        %965 = vmatprep.subr.mxu0 0.0
        %966 = vmatpush1.msra.mxu0 0.0
        %967 = vmatprep.subr.mxu0 0.0
        %968 = vmatpush1.msra.mxu0 0.0
        %969 = vmatprep.subr.mxu0 0.0
        %970 = vmatpush1.msra.mxu0 0.0
        %971 = vmatprep.subr.mxu0 0.0
        %972 = vmatpush1.msra.mxu0 0.0
        %973 = vmatprep.subr.mxu0 0.0
        %v974 = vand.u32 %v309, 4294901760
        %v975 = vsub.f32 %v309, %v974
        %v976 = vand.u32 %v975, 4294901760
        %v977 = vsub.f32 %v975, %v976
        %v978 = vand.u32 %v977, 4294901760
        %979 = vmatpush1.msra.mxu0 %v978
        %980 = vmatprep.subr.mxu0 0.0
        %v981 = vand.u32 %v308, 4294901760
        %v982 = vsub.f32 %v308, %v981
        %v983 = vand.u32 %v982, 4294901760
        %v984 = vsub.f32 %v982, %v983
        %v985 = vand.u32 %v984, 4294901760
        %986 = vmatpush1.msra.mxu0 %v985
        %987 = vmatprep.subr.mxu0 0.0
        %988 = vmatpush2.msra.mxu0 0.0
        %989 = vmatprep.subr.mxu0 0.0
        %990 = vmatpush2.msra.mxu0 0.0
        %991 = vmatprep.subr.mxu0 0.0
        %992 = vmatpush2.msra.mxu0 0.0
        %993 = vmatprep.subr.mxu0 0.0
        %994 = vmatpush2.msra.mxu0 0.0
        %995 = vmatprep.subr.mxu0 0.0
        %996 = vmatpush2.msra.mxu0 0.0
        %997 = vmatprep.subr.mxu0 0.0
        %998 = vmatpush2.msra.mxu0 0.0
        %999 = vmatprep.subr.mxu0 0.0
        %1000 = vmatpush2.msra.mxu0 0.0
        %1001 = vmatprep.subr.mxu0 0.0
        %1002 = vmatpush2.msra.mxu0 0.0
        %1003 = vmatprep.subr.mxu0 0.0
        %1004 = vmatpush2.msra.mxu0 0.0
        %1005 = vmatprep.subr.mxu0 0.0
        %1006 = vmatpush2.msra.mxu0 0.0
        %1007 = vmatprep.subr.mxu0 0.0
        %1008 = vmatpush2.msra.mxu0 0.0
        %1009 = vmatprep.subr.mxu0 0.0
        %1010 = vmatpush2.msra.mxu0 0.0
        %1011 = vmatprep.subr.mxu0 0.0
        %1012 = vmatpush2.msra.mxu0 0.0
        %1013 = vmatprep.subr.mxu0 0.0
        %1014 = vmatpush2.msra.mxu0 0.0
        %1015 = vmatprep.subr.mxu0 0.0
        %1016 = vmatpush2.msra.mxu0 0.0
        %1017 = vmatprep.subr.mxu0 0.0
        %1018 = vmatpush2.msra.mxu0 0.0
        %1019 = vmatprep.mubr.f32.mxu0 0.0
        %v1020 = vand.u32 %v853, 4294901760
        %1021 = vmatmul.mubr.f32.gmra.mxu0 %v1020
        %v1022 = vpop.f32.mrf.mxu0
        %v1023 = vadd.f32 %v932, %v1022
        %v1024 = vpop.f32.mrf.mxu0
        %1025 = vmatprep.mubr.f32.mxu0 0.0
        %v1026 = vand.u32 %v856, 4294901760
        %1027 = vmatmul.mubr.f32.gmra.mxu0 %v1026
        %v1028 = vpop.f32.mrf.mxu0
        %v1029 = vadd.f32 %v942, %v1028
        %v1030 = vpop.f32.mrf.mxu0
        %1031 = vdwg.mxu0
        %1032 = vmatprep.subr.mxu0 0.0
        %1033 = vmatpush1.msra.mxu0 0.0
        %1034 = vmatprep.subr.mxu0 0.0
        %1035 = vmatpush1.msra.mxu0 0.0
        %1036 = vmatprep.subr.mxu0 0.0
        %1037 = vmatpush1.msra.mxu0 0.0
        %1038 = vmatprep.subr.mxu0 0.0
        %1039 = vmatpush1.msra.mxu0 0.0
        %1040 = vmatprep.subr.mxu0 0.0
        %1041 = vmatpush1.msra.mxu0 0.0
        %1042 = vmatprep.subr.mxu0 0.0
        %1043 = vmatpush1.msra.mxu0 0.0
        %1044 = vmatprep.subr.mxu0 0.0
        %1045 = vmatpush1.msra.mxu0 0.0
        %1046 = vmatprep.subr.mxu0 0.0
        %1047 = vmatpush1.msra.mxu0 0.0
        %1048 = vmatprep.subr.mxu0 0.0
        %1049 = vmatpush1.msra.mxu0 0.0
        %1050 = vmatprep.subr.mxu0 0.0
        %1051 = vmatpush1.msra.mxu0 0.0
        %1052 = vmatprep.subr.mxu0 0.0
        %1053 = vmatpush1.msra.mxu0 0.0
        %1054 = vmatprep.subr.mxu0 0.0
        %1055 = vmatpush1.msra.mxu0 0.0
        %1056 = vmatprep.subr.mxu0 0.0
        %1057 = vmatpush1.msra.mxu0 0.0
        %1058 = vmatprep.subr.mxu0 0.0
        %1059 = vmatpush1.msra.mxu0 0.0
        %1060 = vmatprep.subr.mxu0 0.0
        %v1061 = vand.u32 %v309, 4294901760
        %v1062 = vsub.f32 %v309, %v1061
        %1063 = vmatpush1.msra.mxu0 %v1062
        %1064 = vmatprep.subr.mxu0 0.0
        %v1065 = vand.u32 %v308, 4294901760
        %v1066 = vsub.f32 %v308, %v1065
        %1067 = vmatpush1.msra.mxu0 %v1066
        %1068 = vmatprep.subr.mxu0 0.0
        %1069 = vmatpush2.msra.mxu0 0.0
        %1070 = vmatprep.subr.mxu0 0.0
        %1071 = vmatpush2.msra.mxu0 0.0
        %1072 = vmatprep.subr.mxu0 0.0
        %1073 = vmatpush2.msra.mxu0 0.0
        %1074 = vmatprep.subr.mxu0 0.0
        %1075 = vmatpush2.msra.mxu0 0.0
        %1076 = vmatprep.subr.mxu0 0.0
        %1077 = vmatpush2.msra.mxu0 0.0
        %1078 = vmatprep.subr.mxu0 0.0
        %1079 = vmatpush2.msra.mxu0 0.0
        %1080 = vmatprep.subr.mxu0 0.0
        %1081 = vmatpush2.msra.mxu0 0.0
        %1082 = vmatprep.subr.mxu0 0.0
        %1083 = vmatpush2.msra.mxu0 0.0
        %1084 = vmatprep.subr.mxu0 0.0
        %1085 = vmatpush2.msra.mxu0 0.0
        %1086 = vmatprep.subr.mxu0 0.0
        %1087 = vmatpush2.msra.mxu0 0.0
        %1088 = vmatprep.subr.mxu0 0.0
        %1089 = vmatpush2.msra.mxu0 0.0
        %1090 = vmatprep.subr.mxu0 0.0
        %1091 = vmatpush2.msra.mxu0 0.0
        %1092 = vmatprep.subr.mxu0 0.0
        %1093 = vmatpush2.msra.mxu0 0.0
        %1094 = vmatprep.subr.mxu0 0.0
        %1095 = vmatpush2.msra.mxu0 0.0
        %1096 = vmatprep.subr.mxu0 0.0
        %1097 = vmatpush2.msra.mxu0 0.0
        %1098 = vmatprep.subr.mxu0 0.0
        %1099 = vmatpush2.msra.mxu0 0.0
        %1100 = vmatprep.mubr.f32.mxu0 0.0
        %v1101 = vand.u32 %v853, 4294901760
        %v1102 = vsub.f32 %v853, %v1101
        %1103 = vmatmul.mubr.f32.gmra.mxu0 %v1102
        %v1104 = vpop.f32.mrf.mxu0
        %v1105 = vadd.f32 %v1023, %v1104
        %v1106 = vpop.f32.mrf.mxu0
        %1107 = vmatprep.mubr.f32.mxu0 0.0
        %v1108 = vand.u32 %v856, 4294901760
        %v1109 = vsub.f32 %v856, %v1108
        %1110 = vmatmul.mubr.f32.gmra.mxu0 %v1109
        %v1111 = vpop.f32.mrf.mxu0
        %v1112 = vadd.f32 %v1029, %v1111
        %v1113 = vpop.f32.mrf.mxu0
        %1114 = vdwg.mxu0
        %1115 = vmatprep.subr.mxu0 0.0
        %1116 = vmatpush1.msra.mxu0 0.0
        %1117 = vmatprep.subr.mxu0 0.0
        %1118 = vmatpush1.msra.mxu0 0.0
        %1119 = vmatprep.subr.mxu0 0.0
        %1120 = vmatpush1.msra.mxu0 0.0
        %1121 = vmatprep.subr.mxu0 0.0
        %1122 = vmatpush1.msra.mxu0 0.0
        %1123 = vmatprep.subr.mxu0 0.0
        %1124 = vmatpush1.msra.mxu0 0.0
        %1125 = vmatprep.subr.mxu0 0.0
        %1126 = vmatpush1.msra.mxu0 0.0
        %1127 = vmatprep.subr.mxu0 0.0
        %1128 = vmatpush1.msra.mxu0 0.0
        %1129 = vmatprep.subr.mxu0 0.0
        %1130 = vmatpush1.msra.mxu0 0.0
        %1131 = vmatprep.subr.mxu0 0.0
        %1132 = vmatpush1.msra.mxu0 0.0
        %1133 = vmatprep.subr.mxu0 0.0
        %1134 = vmatpush1.msra.mxu0 0.0
        %1135 = vmatprep.subr.mxu0 0.0
        %1136 = vmatpush1.msra.mxu0 0.0
        %1137 = vmatprep.subr.mxu0 0.0
        %1138 = vmatpush1.msra.mxu0 0.0
        %1139 = vmatprep.subr.mxu0 0.0
        %1140 = vmatpush1.msra.mxu0 0.0
        %1141 = vmatprep.subr.mxu0 0.0
        %1142 = vmatpush1.msra.mxu0 0.0
        %1143 = vmatprep.subr.mxu0 0.0
        %v1144 = vand.u32 %v309, 4294901760
        %1145 = vmatpush1.msra.mxu0 %v1144
        %1146 = vmatprep.subr.mxu0 0.0
        %v1147 = vand.u32 %v308, 4294901760
        %1148 = vmatpush1.msra.mxu0 %v1147
        %1149 = vmatprep.subr.mxu0 0.0
        %1150 = vmatpush2.msra.mxu0 0.0
        %1151 = vmatprep.subr.mxu0 0.0
        %1152 = vmatpush2.msra.mxu0 0.0
        %1153 = vmatprep.subr.mxu0 0.0
        %1154 = vmatpush2.msra.mxu0 0.0
        %1155 = vmatprep.subr.mxu0 0.0
        %1156 = vmatpush2.msra.mxu0 0.0
        %1157 = vmatprep.subr.mxu0 0.0
        %1158 = vmatpush2.msra.mxu0 0.0
        %1159 = vmatprep.subr.mxu0 0.0
        %1160 = vmatpush2.msra.mxu0 0.0
        %1161 = vmatprep.subr.mxu0 0.0
        %1162 = vmatpush2.msra.mxu0 0.0
        %1163 = vmatprep.subr.mxu0 0.0
        %1164 = vmatpush2.msra.mxu0 0.0
        %1165 = vmatprep.subr.mxu0 0.0
        %1166 = vmatpush2.msra.mxu0 0.0
        %1167 = vmatprep.subr.mxu0 0.0
        %1168 = vmatpush2.msra.mxu0 0.0
        %1169 = vmatprep.subr.mxu0 0.0
        %1170 = vmatpush2.msra.mxu0 0.0
        %1171 = vmatprep.subr.mxu0 0.0
        %1172 = vmatpush2.msra.mxu0 0.0
        %1173 = vmatprep.subr.mxu0 0.0
        %1174 = vmatpush2.msra.mxu0 0.0
        %1175 = vmatprep.subr.mxu0 0.0
        %1176 = vmatpush2.msra.mxu0 0.0
        %1177 = vmatprep.subr.mxu0 0.0
        %1178 = vmatpush2.msra.mxu0 0.0
        %1179 = vmatprep.subr.mxu0 0.0
        %1180 = vmatpush2.msra.mxu0 0.0
        %1181 = vmatprep.mubr.f32.mxu0 0.0
        %v1182 = vand.u32 %v853, 4294901760
        %v1183 = vsub.f32 %v853, %v1182
        %v1184 = vand.u32 %v1183, 4294901760
        %1185 = vmatmul.mubr.f32.gmra.mxu0 %v1184
        %v1186 = vpop.f32.mrf.mxu0
        %v1187 = vadd.f32 %v1105, %v1186
        %v1188 = vpop.f32.mrf.mxu0
        %1189 = vmatprep.mubr.f32.mxu0 0.0
        %v1190 = vand.u32 %v856, 4294901760
        %v1191 = vsub.f32 %v856, %v1190
        %v1192 = vand.u32 %v1191, 4294901760
        %1193 = vmatmul.mubr.f32.gmra.mxu0 %v1192
        %v1194 = vpop.f32.mrf.mxu0
        %v1195 = vadd.f32 %v1112, %v1194
        %v1196 = vpop.f32.mrf.mxu0
        %1197 = vdwg.mxu0
        %1198 = vmatprep.subr.mxu0 0.0
        %1199 = vmatpush1.msra.mxu0 0.0
        %1200 = vmatprep.subr.mxu0 0.0
        %1201 = vmatpush1.msra.mxu0 0.0
        %1202 = vmatprep.subr.mxu0 0.0
        %1203 = vmatpush1.msra.mxu0 0.0
        %1204 = vmatprep.subr.mxu0 0.0
        %1205 = vmatpush1.msra.mxu0 0.0
        %1206 = vmatprep.subr.mxu0 0.0
        %1207 = vmatpush1.msra.mxu0 0.0
        %1208 = vmatprep.subr.mxu0 0.0
        %1209 = vmatpush1.msra.mxu0 0.0
        %1210 = vmatprep.subr.mxu0 0.0
        %1211 = vmatpush1.msra.mxu0 0.0
        %1212 = vmatprep.subr.mxu0 0.0
        %1213 = vmatpush1.msra.mxu0 0.0
        %1214 = vmatprep.subr.mxu0 0.0
        %1215 = vmatpush1.msra.mxu0 0.0
        %1216 = vmatprep.subr.mxu0 0.0
        %1217 = vmatpush1.msra.mxu0 0.0
        %1218 = vmatprep.subr.mxu0 0.0
        %1219 = vmatpush1.msra.mxu0 0.0
        %1220 = vmatprep.subr.mxu0 0.0
        %1221 = vmatpush1.msra.mxu0 0.0
        %1222 = vmatprep.subr.mxu0 0.0
        %1223 = vmatpush1.msra.mxu0 0.0
        %1224 = vmatprep.subr.mxu0 0.0
        %1225 = vmatpush1.msra.mxu0 0.0
        %1226 = vmatprep.subr.mxu0 0.0
        %v1227 = vand.u32 %v309, 4294901760
        %v1228 = vsub.f32 %v309, %v1227
        %v1229 = vand.u32 %v1228, 4294901760
        %1230 = vmatpush1.msra.mxu0 %v1229
        %1231 = vmatprep.subr.mxu0 0.0
        %v1232 = vand.u32 %v308, 4294901760
        %v1233 = vsub.f32 %v308, %v1232
        %v1234 = vand.u32 %v1233, 4294901760
        %1235 = vmatpush1.msra.mxu0 %v1234
        %1236 = vmatprep.subr.mxu0 0.0
        %1237 = vmatpush2.msra.mxu0 0.0
        %1238 = vmatprep.subr.mxu0 0.0
        %1239 = vmatpush2.msra.mxu0 0.0
        %1240 = vmatprep.subr.mxu0 0.0
        %1241 = vmatpush2.msra.mxu0 0.0
        %1242 = vmatprep.subr.mxu0 0.0
        %1243 = vmatpush2.msra.mxu0 0.0
        %1244 = vmatprep.subr.mxu0 0.0
        %1245 = vmatpush2.msra.mxu0 0.0
        %1246 = vmatprep.subr.mxu0 0.0
        %1247 = vmatpush2.msra.mxu0 0.0
        %1248 = vmatprep.subr.mxu0 0.0
        %1249 = vmatpush2.msra.mxu0 0.0
        %1250 = vmatprep.subr.mxu0 0.0
        %1251 = vmatpush2.msra.mxu0 0.0
        %1252 = vmatprep.subr.mxu0 0.0
        %1253 = vmatpush2.msra.mxu0 0.0
        %1254 = vmatprep.subr.mxu0 0.0
        %1255 = vmatpush2.msra.mxu0 0.0
        %1256 = vmatprep.subr.mxu0 0.0
        %1257 = vmatpush2.msra.mxu0 0.0
        %1258 = vmatprep.subr.mxu0 0.0
        %1259 = vmatpush2.msra.mxu0 0.0
        %1260 = vmatprep.subr.mxu0 0.0
        %1261 = vmatpush2.msra.mxu0 0.0
        %1262 = vmatprep.subr.mxu0 0.0
        %1263 = vmatpush2.msra.mxu0 0.0
        %1264 = vmatprep.subr.mxu0 0.0
        %1265 = vmatpush2.msra.mxu0 0.0
        %1266 = vmatprep.subr.mxu0 0.0
        %1267 = vmatpush2.msra.mxu0 0.0
        %1268 = vmatprep.mubr.f32.mxu0 0.0
        %v1269 = vand.u32 %v853, 4294901760
        %1270 = vmatmul.mubr.f32.gmra.mxu0 %v1269
        %v1271 = vpop.f32.mrf.mxu0
        %v1272 = vadd.f32 %v1187, %v1271
        %v1273 = vpop.f32.mrf.mxu0
        %1274 = vmatprep.mubr.f32.mxu0 0.0
        %v1275 = vand.u32 %v856, 4294901760
        %1276 = vmatmul.mubr.f32.gmra.mxu0 %v1275
        %v1277 = vpop.f32.mrf.mxu0
        %v1278 = vadd.f32 %v1195, %v1277
        %v1279 = vpop.f32.mrf.mxu0
        %1280 = vdwg.mxu0
        %1281 = vmatprep.subr.mxu0 0.0
        %1282 = vmatpush1.msra.mxu0 0.0
        %1283 = vmatprep.subr.mxu0 0.0
        %1284 = vmatpush1.msra.mxu0 0.0
        %1285 = vmatprep.subr.mxu0 0.0
        %1286 = vmatpush1.msra.mxu0 0.0
        %1287 = vmatprep.subr.mxu0 0.0
        %1288 = vmatpush1.msra.mxu0 0.0
        %1289 = vmatprep.subr.mxu0 0.0
        %1290 = vmatpush1.msra.mxu0 0.0
        %1291 = vmatprep.subr.mxu0 0.0
        %1292 = vmatpush1.msra.mxu0 0.0
        %1293 = vmatprep.subr.mxu0 0.0
        %1294 = vmatpush1.msra.mxu0 0.0
        %1295 = vmatprep.subr.mxu0 0.0
        %1296 = vmatpush1.msra.mxu0 0.0
        %1297 = vmatprep.subr.mxu0 0.0
        %1298 = vmatpush1.msra.mxu0 0.0
        %1299 = vmatprep.subr.mxu0 0.0
        %1300 = vmatpush1.msra.mxu0 0.0
        %1301 = vmatprep.subr.mxu0 0.0
        %1302 = vmatpush1.msra.mxu0 0.0
        %1303 = vmatprep.subr.mxu0 0.0
        %1304 = vmatpush1.msra.mxu0 0.0
        %1305 = vmatprep.subr.mxu0 0.0
        %1306 = vmatpush1.msra.mxu0 0.0
        %1307 = vmatprep.subr.mxu0 0.0
        %1308 = vmatpush1.msra.mxu0 0.0
        %1309 = vmatprep.subr.mxu0 0.0
        %v1310 = vand.u32 %v309, 4294901760
        %1311 = vmatpush1.msra.mxu0 %v1310
        %1312 = vmatprep.subr.mxu0 0.0
        %v1313 = vand.u32 %v308, 4294901760
        %1314 = vmatpush1.msra.mxu0 %v1313
        %1315 = vmatprep.subr.mxu0 0.0
        %1316 = vmatpush2.msra.mxu0 0.0
        %1317 = vmatprep.subr.mxu0 0.0
        %1318 = vmatpush2.msra.mxu0 0.0
        %1319 = vmatprep.subr.mxu0 0.0
        %1320 = vmatpush2.msra.mxu0 0.0
        %1321 = vmatprep.subr.mxu0 0.0
        %1322 = vmatpush2.msra.mxu0 0.0
        %1323 = vmatprep.subr.mxu0 0.0
        %1324 = vmatpush2.msra.mxu0 0.0
        %1325 = vmatprep.subr.mxu0 0.0
        %1326 = vmatpush2.msra.mxu0 0.0
        %1327 = vmatprep.subr.mxu0 0.0
        %1328 = vmatpush2.msra.mxu0 0.0
        %1329 = vmatprep.subr.mxu0 0.0
        %1330 = vmatpush2.msra.mxu0 0.0
        %1331 = vmatprep.subr.mxu0 0.0
        %1332 = vmatpush2.msra.mxu0 0.0
        %1333 = vmatprep.subr.mxu0 0.0
        %1334 = vmatpush2.msra.mxu0 0.0
        %1335 = vmatprep.subr.mxu0 0.0
        %1336 = vmatpush2.msra.mxu0 0.0
        %1337 = vmatprep.subr.mxu0 0.0
        %1338 = vmatpush2.msra.mxu0 0.0
        %1339 = vmatprep.subr.mxu0 0.0
        %1340 = vmatpush2.msra.mxu0 0.0
        %1341 = vmatprep.subr.mxu0 0.0
        %1342 = vmatpush2.msra.mxu0 0.0
        %1343 = vmatprep.subr.mxu0 0.0
        %1344 = vmatpush2.msra.mxu0 0.0
        %1345 = vmatprep.subr.mxu0 0.0
        %1346 = vmatpush2.msra.mxu0 0.0
        %1347 = vmatprep.mubr.f32.mxu0 0.0
        %v1348 = vand.u32 %v853, 4294901760
        %1349 = vmatmul.mubr.f32.gmra.mxu0 %v1348
        %v1350 = vpop.f32.mrf.mxu0
        %v1351 = vadd.f32 %v1272, %v1350
        %v1352 = vpop.f32.mrf.mxu0
        %1353 = vmatprep.mubr.f32.mxu0 0.0
        %v1354 = vand.u32 %v856, 4294901760
        %1355 = vmatmul.mubr.f32.gmra.mxu0 %v1354
        %v1356 = vpop.f32.mrf.mxu0
        %v1357 = vadd.f32 %v1278, %v1356
        %v1358 = vpop.f32.mrf.mxu0
        %1359 = vdwg.mxu0
        %1360 = vst.msk [vmem:[%s296] sm:$0xff] %vm312, %v1351
        %1361 = vst.msk [vmem:[%s296 + $0x8] sm:$0xff] %vm312, %v1357
        %s1362 = sand.u32 %s114, 1
        %s1363 = scalar_lea.sflag [#allocation4], %s1362
        %s1364 = sand.u32 %s114, 1
        %s1365 = smul.addr %s1364, 16
        %s1366 = scalar_lea.vmem [#allocation8], %s1365
        %s1367 = sand.u32 %s140, 1
        %s1368 = scalar_lea.sflag [#allocation10], %s1367
        %s1369 = sand.u32 %s140, 1
        %s1370 = smul.addr %s1369, 16
        %s1371 = scalar_lea.vmem [#allocation9], %s1370
        // Predicated region
        $region45: #{tpu_custom_call.1} parent=31 // pred_check
          %p1372 = pneg %p124
        $region46: #{tpu_custom_call.1} parent=31 // pred_check_branch
          %1374 = sbr.rel (%p1372) target = $region48
        $region47: #{tpu_custom_call.1} parent=31 // pred_region
          %s1376 = ssub.s32 256, 256
          %1377 = vsyncadd %s1363, %s1376
          %s1378 = smul.addr %s28, 2
          %s1379 = smul.addr %s1378, 128
          %s1380 = scalar_lea.hbm %s3, %s1379
          %s1381 = sshll.u32 %s1366, 4
          %s1382 = int_to_ptr.vmem [resolvable:$true] %s1381
          %1387 = dma.vmem_to_hbm [thread:$0]  %s1382, 256, %s1380, %s1363, 128, 128, 8
        $region48: #{tpu_custom_call.1} parent=31 // pred_fallthru
          _
        // Predicated region
        $region49: #{tpu_custom_call.1} parent=31 // pred_check
          %p1388 = pneg %p150
        $region50: #{tpu_custom_call.1} parent=31 // pred_check_branch
          %1390 = sbr.rel (%p1388) target = $region52
        $region51: #{tpu_custom_call.1} parent=31 // pred_region
          %s1392 = ssub.s32 256, 256
          %1393 = vsyncadd %s1368, %s1392
          %s1394 = smul.addr %s28, 2
          %s1395 = smul.addr %s1394, 128
          %s1396 = scalar_lea.hbm %s4, %s1395
          %s1397 = sshll.u32 %s1371, 4
          %s1398 = int_to_ptr.vmem [resolvable:$true] %s1397
          %1403 = dma.vmem_to_hbm [thread:$0]  %s1398, 256, %s1396, %s1368, 128, 128, 8
        $region52: #{tpu_custom_call.1} parent=31 // pred_fallthru
          _
      $region32: #{tpu_custom_call.1} parent=5 // pred_fallthru
        _
      %p1404 = scmp.le.s32.totalorder 2, %s23
      // Predicated region
      $region53: #{tpu_custom_call.1} parent=5 // pred_check
        %p1405 = pneg %p1404
      $region54: #{tpu_custom_call.1} parent=5 // pred_check_branch
        %1407 = sbr.rel (%p1405) target = $region56
      $region55: #{tpu_custom_call.1} parent=5 // pred_region
        %s1408 = ssub.s32 %s23, 2
        // Predicated region
        $region57: #{tpu_custom_call.1} parent=55 // pred_check
          %p1409 = pneg %p130
        $region58: #{tpu_custom_call.1} parent=55 // pred_check_branch
          %1411 = sbr.rel (%p1409) target = $region60
        $region59: #{tpu_custom_call.1} parent=55 // pred_region
          %s1412 = sand.u32 %s115, 1
          %s1413 = scalar_lea.sflag [#allocation4], %s1412
          %s1414 = sand.u32 %s115, 1
          %s1415 = smul.addr %s1414, 16
          %s1416 = scalar_lea.vmem [#allocation8], %s1415
          %1417 = dma.done %s1413, 256
        $region60: #{tpu_custom_call.1} parent=55 // pred_fallthru
          _
        // Predicated region
        $region61: #{tpu_custom_call.1} parent=55 // pred_check
          %p1418 = pneg %p156
        $region62: #{tpu_custom_call.1} parent=55 // pred_check_branch
          %1420 = sbr.rel (%p1418) target = $region64
        $region63: #{tpu_custom_call.1} parent=55 // pred_region
          %s1421 = sand.u32 %s141, 1
          %s1422 = scalar_lea.sflag [#allocation10], %s1421
          %s1423 = sand.u32 %s141, 1
          %s1424 = smul.addr %s1423, 16
          %s1425 = scalar_lea.vmem [#allocation9], %s1424
          %1426 = dma.done %s1422, 256
        $region64: #{tpu_custom_call.1} parent=55 // pred_fallthru
          _
      $region56: #{tpu_custom_call.1} parent=5 // pred_fallthru
        _
    $region6: #{tpu_custom_call.1} parent=1 // loop_footer
      %s27 = sadd.s32 1, %s23
    $region7: #{tpu_custom_call.1} parent=1 // loop_footer_branch
      %22 = sbr.rel target = $region3
    $region8: #{tpu_custom_call.1} parent=1 // loop_exit
      _
    %1427 = vsyncpa [#allocation3], 1
    %s1428 = scalar_lea.sflag [#allocation3], 1
    %1429 = vsyncpa %s1428, 1
    %1430 = vsyncpa [#allocation6], 1
    %s1431 = scalar_lea.sflag [#allocation6], 1
    %1432 = vsyncpa %s1431, 1
    %1433 = vsyncpa [#allocation4], 1
    %s1434 = scalar_lea.sflag [#allocation4], 1
    %1435 = vsyncpa %s1434, 1
    %1436 = vsyncpa [#allocation10], 1
    %s1437 = scalar_lea.sflag [#allocation10], 1
    %1438 = vsyncpa %s1437, 1

</llo_original>
